<compile_context>
chip_gen: v6e
topology: v6e:2x2x1
jax: 0.10.0
libtpu: 0.0.40
codegen_flags: <defaults>
</compile_context>

<pallas_src>
import jax
import jax.numpy as jnp
from jax import lax
from jax.experimental import pallas as pl
from jax.experimental.pallas import tpu as pltpu


# ----------------------------------------------------------------------------
# One fused kernel: spatial layer + LSTM input proj + LSTM recurrence + head.
# All operands are whole-array VMEM residents (total footprint < 1 MiB).
# ----------------------------------------------------------------------------
def geml_fused_kernel(x_ref, disb_ref, mask_ref, ptime_ref, plast_ref,
                      wg_ref, ws_ref, wx_ref, bx_ref, wh_ref,
                      wlin_ref, blin_ref, out_ref):
    f32 = jnp.float32
    eps = 1e-6

    B, O, _ = out_ref.shape            # (B, O, O)
    BLO, D = x_ref.shape               # x flattened to (B*L*O, D)
    H = wh_ref.shape[0]                # d_model
    N = B * O                          # LSTM "batch" after the .view() scramble
    L = BLO // N

    x2 = x_ref[...]                    # (BLO, D)
    mask = mask_ref[...]               # (BLO, BLO) block-diagonal 0/1 mask over (b, l)

    # ---- Grid_Embedding (assumed): geographic weights = row-normalized distances ----
    # dis_big is the distance matrix replicated to every (b,l) block (pure replication);
    # the actual normalization (the compute) happens here, in-kernel.
    gmask = disb_ref[...] * mask                                       # (BLO, BLO)
    g_big = gmask / (jnp.sum(gmask, axis=-1, keepdims=True) + eps)
    # NOTE(v5e): pl.reciprocal(row_sum + eps, approx=True) would push the divide to the
    # EUP slot; kept as exact division here to stay bit-close to the reference.

    # ---- semantic weights: masked flow similarity x @ x^T, row-normalized -----------
    smask = lax.dot_general(x2, x2, (((1,), (1,)), ((), ())),
                            preferred_element_type=f32) * mask          # (BLO, BLO)
    s_big = smask / (jnp.sum(smask, axis=-1, keepdims=True) + eps)

    # ---- merged neighbour aggregation + composed D->D projections + ReLU ------------
    #   relu(G@x@wg + S@x@ws) == relu([G | S] @ [[x@wg],[x@ws]])   (single K=2*BLO matmul)
    xwg = jnp.dot(x2, wg_ref[...], preferred_element_type=f32)          # (BLO, D)
    xws = jnp.dot(x2, ws_ref[...], preferred_element_type=f32)          # (BLO, D)
    lhs = jnp.concatenate([g_big, s_big], axis=1)                       # (BLO, 2*BLO) 128-aligned
    rhs = jnp.concatenate([xwg, xws], axis=0)                           # (2*BLO, D)
    spat = jnp.maximum(jnp.dot(lhs, rhs, preferred_element_type=f32), 0.0)   # (BLO, D)

    # ---- PyTorch .view(B*O, L, D) scramble, done as a row-permutation matmul --------
    # spat_tm rows are timestep-major: rows [l*N, (l+1)*N) = timestep l for all N seqs.
    spat_tm = jnp.dot(ptime_ref[...], spat, preferred_element_type=f32)      # (BLO, D)

    # ---- LSTM input projection for ALL timesteps (lane-dense 4H output) -------------
    xproj = (jnp.dot(spat_tm, wx_ref[...], preferred_element_type=f32)
             + bx_ref[...])                                                  # (BLO, 4H)

    # ---- LSTM recurrence (unrolled; gate order i, f, g, o as torch) ------------------
    wh = wh_ref[...]                                                         # (H, 4H)
    h = jnp.zeros((N, H), f32)
    c = jnp.zeros((N, H), f32)
    hs = []
    for l in range(L):                              # L small & static: fully unrolled
        g = xproj[l * N:(l + 1) * N, :]             # contiguous, tile-aligned slab (N, 4H)
        if l > 0:
            g = g + jnp.dot(h, wh, preferred_element_type=f32)
        sg = jax.nn.sigmoid(g)                      # full-width EUP op on all 4H lanes
        tg = jnp.tanh(g)                            # full-width EUP op on all 4H lanes
        i_g = sg[:, 0 * H:1 * H]
        f_g = sg[:, 1 * H:2 * H]
        g_g = tg[:, 2 * H:3 * H]
        o_g = sg[:, 3 * H:4 * H]
        c = f_g * c + i_g * g_g
        h = o_g * jnp.tanh(c)
        hs.append(h)
    hstack = jnp.concatenate(hs, axis=0)                                     # (L*N, H)

    # ---- rows/timesteps actually consumed by .reshape(B,L,O,-1)[:, -1:] --------------
    # (another static 0/1 selection matmul; never round-trips through HBM)
    t_last = jnp.dot(plast_ref[...], hstack, preferred_element_type=f32)     # (B*O, H)

    # ---- head: Linear(d_model->d_model) + y @ t^T per batch --------------------------
    y = (jnp.dot(t_last, wlin_ref[...], preferred_element_type=f32)
         + blin_ref[...])                                                    # (B*O, H)
    for b in range(B):                               # B static & tiny: unrolled
        yb = y[b * O:(b + 1) * O, :]
        tb = t_last[b * O:(b + 1) * O, :]
        out_ref[b] = lax.dot_general(yb, tb, (((1,), (1,)), ((), ())),
                                     preferred_element_type=f32)             # (O, O)


# ----------------------------------------------------------------------------
# Wrapper: free row-major reshapes, tiny weight fusion, and static (shape-only)
# selection operators.  No data-dependent math is moved out of the kernel.
# ----------------------------------------------------------------------------
def geml_forward(X, dis_matrix, p):
    B, L, O, D = X.shape
    H = p["w_lin_t"].shape[0]           # d_model
    N = B * O
    BL = B * L
    BLO = BL * O
    f32 = jnp.float32

    # ---- host-side parameter prep: compose projections, fuse LSTM gates (i,f,g,o) ----
    wg = p["w_geo"] @ p["w_out_geo"]                                         # (D, D)
    ws = p["w_sem"] @ p["w_out_sem"]                                         # (D, D)
    wx = jnp.concatenate([p["wxi"], p["wxf"], p["wxg"], p["wxo"]], axis=1)   # (D, 4H)
    wh = jnp.concatenate([p["whi"], p["whf"], p["whg"], p["who"]], axis=1)   # (H, 4H)
    bx = jnp.concatenate([p["bi"], p["bf"], p["bg"], p["bo"]], axis=1)       # (1, 4H)

    # ---- static, shape-derived operators (like an attention mask) --------------------
    # block-diagonal mask over the (b, l) slices
    blk = jnp.arange(BLO) // O
    mask = (blk[:, None] == blk[None, :]).astype(f32)                        # (BLO, BLO)
    # row permutation implementing spat.view(B*O, L, D) in timestep-major order:
    # dst row l*N + n  <-  src row n*L + l
    r = jnp.arange(BLO)
    p_time = jax.nn.one_hot((r % N) * L + (r // N), BLO, dtype=f32)          # (BLO, BLO)
    # selection implementing temp_out.reshape(B, L, O, -1)[:, -1:] on the (L*N, H) stack
    m = jnp.arange(N)
    k = (m // O) * (L * O) + (L - 1) * O + (m % O)
    p_last = jax.nn.one_hot((k % L) * N + (k // L), L * N, dtype=f32)        # (N, L*N)

    # distance matrix replicated to every (b, l) block (pure replication, no arithmetic;
    # the row-normalization stays inside the kernel)
    dis_big = jnp.tile(dis_matrix, (BL, BL))                                 # (BLO, BLO)

    x2 = X.reshape(BLO, D)                                                   # free reshape

    vmem = pl.BlockSpec(memory_space=pltpu.MemorySpace.VMEM)
    out = pl.pallas_call(
        geml_fused_kernel,
        out_shape=jax.ShapeDtypeStruct((B, O, O), f32),
        in_specs=[vmem] * 12,
        out_specs=vmem,
    )(x2, dis_big, mask, p_time, p_last,
      wg, ws, wx, bx, wh, p["w_lin_t"], p["b_lin"])

    return out[:, None]                                                      # (B, 1, O, O)


# ----------------------------------------------------------------------------
# Pure-JAX reference (uncomposed weights, unfused gates) for correctness check
# ----------------------------------------------------------------------------
def geml_reference(X, dis, p):
    B, L, O, D = X.shape
    H = p["w_lin_t"].shape[0]
    eps = 1e-6
    geo = dis / (jnp.sum(dis, -1, keepdims=True) + eps)
    geo_agg = jnp.einsum("ij,bljd->blid", geo, X)
    sem_raw = jnp.einsum("blid,bljd->blij", X, X)
    sem = sem_raw / (jnp.sum(sem_raw, -1, keepdims=True) + eps)
    sem_agg = jnp.einsum("blij,bljd->blid", sem, X)
    spat = jnp.maximum(geo_agg @ p["w_geo"] @ p["w_out_geo"]
                       + sem_agg @ p["w_sem"] @ p["w_out_sem"], 0.0)
    lstm_in = spat.reshape(B * O, L, D)
    N = B * O
    h = jnp.zeros((N, H), jnp.float32)
    c = jnp.zeros((N, H), jnp.float32)
    outs = []
    for l in range(L):
        xt = lstm_in[:, l]
        i = jax.nn.sigmoid(xt @ p["wxi"] + h @ p["whi"] + p["bi"])
        f = jax.nn.sigmoid(xt @ p["wxf"] + h @ p["whf"] + p["bf"])
        g = jnp.tanh(xt @ p["wxg"] + h @ p["whg"] + p["bg"])
        o = jax.nn.sigmoid(xt @ p["wxo"] + h @ p["who"] + p["bo"])
        c = f * c + i * g
        h = o * jnp.tanh(c)
        outs.append(h)
    temp_out = jnp.stack(outs, axis=1)                                  # (N, L, H)
    temp_last = temp_out.reshape(B, L, O, H)[:, -1]                     # (B, O, H)
    y = temp_last @ p["w_lin_t"] + p["b_lin"]
    out = jnp.einsum("boh,bph->bop", y, temp_last)
    return out[:, None]


# ----------------------------------------------------------------------------
# Deterministic parameter init + example run
# ----------------------------------------------------------------------------
def init_params(key, num_tiles, d_model):
    D, H = num_tiles, d_model
    ks = jax.random.split(key, 20)
    s = 0.1
    p = {
        # Grid_Embedding (assumed GEML-style)
        "w_geo":     s * jax.random.normal(ks[0], (D, H), jnp.float32),
        "w_sem":     s * jax.random.normal(ks[1], (D, H), jnp.float32),
        "w_out_geo": s * jax.random.normal(ks[2], (H, D), jnp.float32),
        "w_out_sem": s * jax.random.normal(ks[3], (H, D), jnp.float32),
        # LSTM (input_size=num_tiles, hidden_size=d_model), pre-transposed weights
        "wxi": s * jax.random.normal(ks[4], (D, H), jnp.float32),
        "wxf": s * jax.random.normal(ks[5], (D, H), jnp.float32),
        "wxg": s * jax.random.normal(ks[6], (D, H), jnp.float32),
        "wxo": s * jax.random.normal(ks[7], (D, H), jnp.float32),
        "whi": s * jax.random.normal(ks[8], (H, H), jnp.float32),
        "whf": s * jax.random.normal(ks[9], (H, H), jnp.float32),
        "whg": s * jax.random.normal(ks[10], (H, H), jnp.float32),
        "who": s * jax.random.normal(ks[11], (H, H), jnp.float32),
        "bi": s * jax.random.normal(ks[12], (1, H), jnp.float32),
        "bf": s * jax.random.normal(ks[13], (1, H), jnp.float32),
        "bg": s * jax.random.normal(ks[14], (1, H), jnp.float32),
        "bo": s * jax.random.normal(ks[15], (1, H), jnp.float32),
        # Linear(d_model -> d_model), stored transposed for x @ W
        "w_lin_t": s * jax.random.normal(ks[16], (H, H), jnp.float32),
        "b_lin":   s * jax.random.normal(ks[17], (1, H), jnp.float32),
    }
    return p


if __name__ == "__main__":
    B, L = 2, 4
    num_tiles = 16          # O == D == num_tiles
    d_model = 32

    key = jax.random.PRNGKey(0)
    kx, kd, kp = jax.random.split(key, 3)
    X = jax.random.uniform(kx, (B, L, num_tiles, num_tiles), jnp.float32)
    dis_matrix = jax.random.uniform(kd, (num_tiles, num_tiles), jnp.float32) + 0.1
    params = init_params(kp, num_tiles, d_model)

    out = geml_forward(X, dis_matrix, params)
    out = jax.block_until_ready(out)
    assert out.shape == (B, 1, num_tiles, num_tiles)

    ref = jax.block_until_ready(geml_reference(X, dis_matrix, params))
    assert jnp.allclose(out, ref, rtol=1e-3, atol=1e-3)

    print("KERNEL_OK")
</pallas_src>

<mosaic_0001>
module attributes {stable_mosaic.version = 11 : i64} {
  func.func @geml_fused_kernel(%arg0: memref<128x16xf32, #tpu.memory_space<vmem>>, %arg1: memref<128x128xf32, #tpu.memory_space<vmem>>, %arg2: memref<128x128xf32, #tpu.memory_space<vmem>>, %arg3: memref<128x128xf32, #tpu.memory_space<vmem>>, %arg4: memref<32x128xf32, #tpu.memory_space<vmem>>, %arg5: memref<16x16xf32, #tpu.memory_space<vmem>>, %arg6: memref<16x16xf32, #tpu.memory_space<vmem>>, %arg7: memref<16x128xf32, #tpu.memory_space<vmem>>, %arg8: memref<1x128xf32, #tpu.memory_space<vmem>>, %arg9: memref<32x128xf32, #tpu.memory_space<vmem>>, %arg10: memref<32x32xf32, #tpu.memory_space<vmem>>, %arg11: memref<1x32xf32, #tpu.memory_space<vmem>>, %arg12: memref<2x16x16xf32, #tpu.memory_space<vmem>>) attributes {dimension_semantics = [], scalar_prefetch = 0 : i64, scratch_operands = 0 : i64, tpu.core_type = #tpu.core_type<tc>} {
    %c0 = arith.constant 0 : index
    %c0_0 = arith.constant 0 : index
    %0 = vector.load %arg0[%c0, %c0_0] : memref<128x16xf32, #tpu.memory_space<vmem>>, vector<128x16xf32>
    %c0_1 = arith.constant 0 : index
    %c0_2 = arith.constant 0 : index
    %1 = vector.load %arg2[%c0_1, %c0_2] : memref<128x128xf32, #tpu.memory_space<vmem>>, vector<128x128xf32>
    %c0_3 = arith.constant 0 : index
    %c0_4 = arith.constant 0 : index
    %2 = vector.load %arg1[%c0_3, %c0_4] : memref<128x128xf32, #tpu.memory_space<vmem>>, vector<128x128xf32>
    %3 = arith.mulf %2, %1 : vector<128x128xf32>
    %cst = arith.constant dense<0.000000e+00> : vector<128xf32>
    %4 = vector.multi_reduction <add>, %3, %cst [1] : vector<128x128xf32> to vector<128xf32>
    %5 = vector.shape_cast %4 : vector<128xf32> to vector<128x1xf32>
    %cst_5 = arith.constant 9.99999997E-7 : f32
    %6 = vector.broadcast %cst_5 : f32 to vector<128x1xf32>
    %7 = arith.addf %5, %6 : vector<128x1xf32>
    %8 = vector.broadcast %7 : vector<128x1xf32> to vector<128x128xf32>
    %9 = arith.divf %3, %8 : vector<128x128xf32>
    %cst_6 = arith.constant dense<0.000000e+00> : vector<128x128xf32>
    %10 = tpu.matmul %0, %0, %cst_6 {dimension_numbers = #tpu.dot_dimension_numbers<[1], [1], [0], [0], [0, 0, 1, 0], [], []>} : vector<128x16xf32>, vector<128x16xf32>, vector<128x128xf32> -> vector<128x128xf32>
    %11 = arith.mulf %10, %1 : vector<128x128xf32>
    %cst_7 = arith.constant dense<0.000000e+00> : vector<128xf32>
    %12 = vector.multi_reduction <add>, %11, %cst_7 [1] : vector<128x128xf32> to vector<128xf32>
    %13 = vector.shape_cast %12 : vector<128xf32> to vector<128x1xf32>
    %cst_8 = arith.constant 9.99999997E-7 : f32
    %14 = vector.broadcast %cst_8 : f32 to vector<128x1xf32>
    %15 = arith.addf %13, %14 : vector<128x1xf32>
    %16 = vector.broadcast %15 : vector<128x1xf32> to vector<128x128xf32>
    %17 = arith.divf %11, %16 : vector<128x128xf32>
    %c0_9 = arith.constant 0 : index
    %c0_10 = arith.constant 0 : index
    %18 = vector.load %arg5[%c0_9, %c0_10] : memref<16x16xf32, #tpu.memory_space<vmem>>, vector<16x16xf32>
    %cst_11 = arith.constant dense<0.000000e+00> : vector<128x16xf32>
    %19 = tpu.matmul %0, %18, %cst_11 {dimension_numbers = #tpu.dot_dimension_numbers<[1], [0], [0], [1], [0, 0, 1, 1], [], []>} : vector<128x16xf32>, vector<16x16xf32>, vector<128x16xf32> -> vector<128x16xf32>
    %c0_12 = arith.constant 0 : index
    %c0_13 = arith.constant 0 : index
    %20 = vector.load %arg6[%c0_12, %c0_13] : memref<16x16xf32, #tpu.memory_space<vmem>>, vector<16x16xf32>
    %cst_14 = arith.constant dense<0.000000e+00> : vector<128x16xf32>
    %21 = tpu.matmul %0, %20, %cst_14 {dimension_numbers = #tpu.dot_dimension_numbers<[1], [0], [0], [1], [0, 0, 1, 1], [], []>} : vector<128x16xf32>, vector<16x16xf32>, vector<128x16xf32> -> vector<128x16xf32>
    %22 = tpu.concatenate %9, %17 in 1 : vector<128x128xf32>, vector<128x128xf32> -> vector<128x256xf32>
    %23 = tpu.concatenate %19, %21 in 0 : vector<128x16xf32>, vector<128x16xf32> -> vector<256x16xf32>
    %cst_15 = arith.constant dense<0.000000e+00> : vector<128x16xf32>
    %24 = tpu.matmul %22, %23, %cst_15 {dimension_numbers = #tpu.dot_dimension_numbers<[1], [0], [0], [1], [0, 0, 1, 1], [], []>} : vector<128x256xf32>, vector<256x16xf32>, vector<128x16xf32> -> vector<128x16xf32>
    %cst_16 = arith.constant 0.000000e+00 : f32
    %25 = vector.broadcast %cst_16 : f32 to vector<128x16xf32>
    %26 = arith.maximumf %24, %25 : vector<128x16xf32>
    %c0_17 = arith.constant 0 : index
    %c0_18 = arith.constant 0 : index
    %27 = vector.load %arg3[%c0_17, %c0_18] : memref<128x128xf32, #tpu.memory_space<vmem>>, vector<128x128xf32>
    %cst_19 = arith.constant dense<0.000000e+00> : vector<128x16xf32>
    %28 = tpu.matmul %27, %26, %cst_19 {dimension_numbers = #tpu.dot_dimension_numbers<[1], [0], [0], [1], [0, 0, 1, 1], [], []>} : vector<128x128xf32>, vector<128x16xf32>, vector<128x16xf32> -> vector<128x16xf32>
    %c0_20 = arith.constant 0 : index
    %c0_21 = arith.constant 0 : index
    %29 = vector.load %arg7[%c0_20, %c0_21] : memref<16x128xf32, #tpu.memory_space<vmem>>, vector<16x128xf32>
    %cst_22 = arith.constant dense<0.000000e+00> : vector<128x128xf32>
    %30 = tpu.matmul %28, %29, %cst_22 {dimension_numbers = #tpu.dot_dimension_numbers<[1], [0], [0], [1], [0, 0, 1, 1], [], []>} : vector<128x16xf32>, vector<16x128xf32>, vector<128x128xf32> -> vector<128x128xf32>
    %c0_23 = arith.constant 0 : index
    %c0_24 = arith.constant 0 : index
    %31 = vector.load %arg8[%c0_23, %c0_24] : memref<1x128xf32, #tpu.memory_space<vmem>>, vector<1x128xf32>
    %32 = vector.broadcast %31 : vector<1x128xf32> to vector<128x128xf32>
    %33 = arith.addf %30, %32 : vector<128x128xf32>
    %c0_25 = arith.constant 0 : index
    %c0_26 = arith.constant 0 : index
    %34 = vector.load %arg9[%c0_25, %c0_26] : memref<32x128xf32, #tpu.memory_space<vmem>>, vector<32x128xf32>
    %cst_27 = arith.constant 0.000000e+00 : f32
    %35 = vector.broadcast %cst_27 : f32 to vector<32x32xf32>
    %36 = vector.extract_strided_slice %33 {offsets = [0, 0], sizes = [32, 128], strides = [1, 1]} : vector<128x128xf32> to vector<32x128xf32>
    %37 = arith.negf %36 : vector<32x128xf32>
    %38 = math.exp %37 : vector<32x128xf32>
    %cst_28 = arith.constant 1.000000e+00 : f32
    %39 = vector.broadcast %cst_28 : f32 to vector<32x128xf32>
    %40 = arith.addf %39, %38 : vector<32x128xf32>
    %41 = arith.divf %39, %40 : vector<32x128xf32>
    %42 = math.tanh %36 : vector<32x128xf32>
    %43 = vector.extract_strided_slice %41 {offsets = [0, 0], sizes = [32, 32], strides = [1, 1]} : vector<32x128xf32> to vector<32x32xf32>
    %44 = vector.extract_strided_slice %41 {offsets = [0, 32], sizes = [32, 32], strides = [1, 1]} : vector<32x128xf32> to vector<32x32xf32>
    %45 = vector.extract_strided_slice %42 {offsets = [0, 64], sizes = [32, 32], strides = [1, 1]} : vector<32x128xf32> to vector<32x32xf32>
    %46 = vector.extract_strided_slice %41 {offsets = [0, 96], sizes = [32, 32], strides = [1, 1]} : vector<32x128xf32> to vector<32x32xf32>
    %47 = arith.mulf %44, %35 : vector<32x32xf32>
    %48 = arith.mulf %43, %45 : vector<32x32xf32>
    %49 = arith.addf %47, %48 : vector<32x32xf32>
    %50 = math.tanh %49 : vector<32x32xf32>
    %51 = arith.mulf %46, %50 : vector<32x32xf32>
    %52 = vector.extract_strided_slice %33 {offsets = [32, 0], sizes = [32, 128], strides = [1, 1]} : vector<128x128xf32> to vector<32x128xf32>
    %cst_29 = arith.constant dense<0.000000e+00> : vector<32x128xf32>
    %53 = tpu.matmul %51, %34, %cst_29 {dimension_numbers = #tpu.dot_dimension_numbers<[1], [0], [0], [1], [0, 0, 1, 1], [], []>} : vector<32x32xf32>, vector<32x128xf32>, vector<32x128xf32> -> vector<32x128xf32>
    %54 = arith.addf %52, %53 : vector<32x128xf32>
    %55 = arith.negf %54 : vector<32x128xf32>
    %56 = math.exp %55 : vector<32x128xf32>
    %cst_30 = arith.constant 1.000000e+00 : f32
    %57 = vector.broadcast %cst_30 : f32 to vector<32x128xf32>
    %58 = arith.addf %57, %56 : vector<32x128xf32>
    %59 = arith.divf %57, %58 : vector<32x128xf32>
    %60 = math.tanh %54 : vector<32x128xf32>
    %61 = vector.extract_strided_slice %59 {offsets = [0, 0], sizes = [32, 32], strides = [1, 1]} : vector<32x128xf32> to vector<32x32xf32>
    %62 = vector.extract_strided_slice %59 {offsets = [0, 32], sizes = [32, 32], strides = [1, 1]} : vector<32x128xf32> to vector<32x32xf32>
    %63 = vector.extract_strided_slice %60 {offsets = [0, 64], sizes = [32, 32], strides = [1, 1]} : vector<32x128xf32> to vector<32x32xf32>
    %64 = vector.extract_strided_slice %59 {offsets = [0, 96], sizes = [32, 32], strides = [1, 1]} : vector<32x128xf32> to vector<32x32xf32>
    %65 = arith.mulf %62, %49 : vector<32x32xf32>
    %66 = arith.mulf %61, %63 : vector<32x32xf32>
    %67 = arith.addf %65, %66 : vector<32x32xf32>
    %68 = math.tanh %67 : vector<32x32xf32>
    %69 = arith.mulf %64, %68 : vector<32x32xf32>
    %70 = vector.extract_strided_slice %33 {offsets = [64, 0], sizes = [32, 128], strides = [1, 1]} : vector<128x128xf32> to vector<32x128xf32>
    %cst_31 = arith.constant dense<0.000000e+00> : vector<32x128xf32>
    %71 = tpu.matmul %69, %34, %cst_31 {dimension_numbers = #tpu.dot_dimension_numbers<[1], [0], [0], [1], [0, 0, 1, 1], [], []>} : vector<32x32xf32>, vector<32x128xf32>, vector<32x128xf32> -> vector<32x128xf32>
    %72 = arith.addf %70, %71 : vector<32x128xf32>
    %73 = arith.negf %72 : vector<32x128xf32>
    %74 = math.exp %73 : vector<32x128xf32>
    %cst_32 = arith.constant 1.000000e+00 : f32
    %75 = vector.broadcast %cst_32 : f32 to vector<32x128xf32>
    %76 = arith.addf %75, %74 : vector<32x128xf32>
    %77 = arith.divf %75, %76 : vector<32x128xf32>
    %78 = math.tanh %72 : vector<32x128xf32>
    %79 = vector.extract_strided_slice %77 {offsets = [0, 0], sizes = [32, 32], strides = [1, 1]} : vector<32x128xf32> to vector<32x32xf32>
    %80 = vector.extract_strided_slice %77 {offsets = [0, 32], sizes = [32, 32], strides = [1, 1]} : vector<32x128xf32> to vector<32x32xf32>
    %81 = vector.extract_strided_slice %78 {offsets = [0, 64], sizes = [32, 32], strides = [1, 1]} : vector<32x128xf32> to vector<32x32xf32>
    %82 = vector.extract_strided_slice %77 {offsets = [0, 96], sizes = [32, 32], strides = [1, 1]} : vector<32x128xf32> to vector<32x32xf32>
    %83 = arith.mulf %80, %67 : vector<32x32xf32>
    %84 = arith.mulf %79, %81 : vector<32x32xf32>
    %85 = arith.addf %83, %84 : vector<32x32xf32>
    %86 = math.tanh %85 : vector<32x32xf32>
    %87 = arith.mulf %82, %86 : vector<32x32xf32>
    %88 = vector.extract_strided_slice %33 {offsets = [96, 0], sizes = [32, 128], strides = [1, 1]} : vector<128x128xf32> to vector<32x128xf32>
    %cst_33 = arith.constant dense<0.000000e+00> : vector<32x128xf32>
    %89 = tpu.matmul %87, %34, %cst_33 {dimension_numbers = #tpu.dot_dimension_numbers<[1], [0], [0], [1], [0, 0, 1, 1], [], []>} : vector<32x32xf32>, vector<32x128xf32>, vector<32x128xf32> -> vector<32x128xf32>
    %90 = arith.addf %88, %89 : vector<32x128xf32>
    %91 = arith.negf %90 : vector<32x128xf32>
    %92 = math.exp %91 : vector<32x128xf32>
    %cst_34 = arith.constant 1.000000e+00 : f32
    %93 = vector.broadcast %cst_34 : f32 to vector<32x128xf32>
    %94 = arith.addf %93, %92 : vector<32x128xf32>
    %95 = arith.divf %93, %94 : vector<32x128xf32>
    %96 = math.tanh %90 : vector<32x128xf32>
    %97 = vector.extract_strided_slice %95 {offsets = [0, 0], sizes = [32, 32], strides = [1, 1]} : vector<32x128xf32> to vector<32x32xf32>
    %98 = vector.extract_strided_slice %95 {offsets = [0, 32], sizes = [32, 32], strides = [1, 1]} : vector<32x128xf32> to vector<32x32xf32>
    %99 = vector.extract_strided_slice %96 {offsets = [0, 64], sizes = [32, 32], strides = [1, 1]} : vector<32x128xf32> to vector<32x32xf32>
    %100 = vector.extract_strided_slice %95 {offsets = [0, 96], sizes = [32, 32], strides = [1, 1]} : vector<32x128xf32> to vector<32x32xf32>
    %101 = arith.mulf %98, %85 : vector<32x32xf32>
    %102 = arith.mulf %97, %99 : vector<32x32xf32>
    %103 = arith.addf %101, %102 : vector<32x32xf32>
    %104 = math.tanh %103 : vector<32x32xf32>
    %105 = arith.mulf %100, %104 : vector<32x32xf32>
    %106 = tpu.concatenate %51, %69, %87, %105 in 0 : vector<32x32xf32>, vector<32x32xf32>, vector<32x32xf32>, vector<32x32xf32> -> vector<128x32xf32>
    %c0_35 = arith.constant 0 : index
    %c0_36 = arith.constant 0 : index
    %107 = vector.load %arg4[%c0_35, %c0_36] : memref<32x128xf32, #tpu.memory_space<vmem>>, vector<32x128xf32>
    %cst_37 = arith.constant dense<0.000000e+00> : vector<32x32xf32>
    %108 = tpu.matmul %107, %106, %cst_37 {dimension_numbers = #tpu.dot_dimension_numbers<[1], [0], [0], [1], [0, 0, 1, 1], [], []>} : vector<32x128xf32>, vector<128x32xf32>, vector<32x32xf32> -> vector<32x32xf32>
    %c0_38 = arith.constant 0 : index
    %c0_39 = arith.constant 0 : index
    %109 = vector.load %arg10[%c0_38, %c0_39] : memref<32x32xf32, #tpu.memory_space<vmem>>, vector<32x32xf32>
    %cst_40 = arith.constant dense<0.000000e+00> : vector<32x32xf32>
    %110 = tpu.matmul %108, %109, %cst_40 {dimension_numbers = #tpu.dot_dimension_numbers<[1], [0], [0], [1], [0, 0, 1, 1], [], []>} : vector<32x32xf32>, vector<32x32xf32>, vector<32x32xf32> -> vector<32x32xf32>
    %c0_41 = arith.constant 0 : index
    %c0_42 = arith.constant 0 : index
    %111 = vector.load %arg11[%c0_41, %c0_42] : memref<1x32xf32, #tpu.memory_space<vmem>>, vector<1x32xf32>
    %112 = vector.broadcast %111 : vector<1x32xf32> to vector<32x32xf32>
    %113 = arith.addf %110, %112 : vector<32x32xf32>
    %114 = vector.extract_strided_slice %113 {offsets = [0, 0], sizes = [16, 32], strides = [1, 1]} : vector<32x32xf32> to vector<16x32xf32>
    %115 = vector.extract_strided_slice %108 {offsets = [0, 0], sizes = [16, 32], strides = [1, 1]} : vector<32x32xf32> to vector<16x32xf32>
    %cst_43 = arith.constant dense<0.000000e+00> : vector<16x16xf32>
    %116 = tpu.matmul %114, %115, %cst_43 {dimension_numbers = #tpu.dot_dimension_numbers<[1], [1], [0], [0], [0, 0, 1, 0], [], []>} : vector<16x32xf32>, vector<16x32xf32>, vector<16x16xf32> -> vector<16x16xf32>
    %c0_44 = arith.constant 0 : index
    %c0_45 = arith.constant 0 : index
    %c0_46 = arith.constant 0 : index
    %117 = vector.load %arg12[%c0_44, %c0_45, %c0_46] : memref<2x16x16xf32, #tpu.memory_space<vmem>>, vector<1x16x16xf32>
    %118 = vector.shape_cast %117 : vector<1x16x16xf32> to vector<16x16xf32>
    %119 = vector.shape_cast %116 : vector<16x16xf32> to vector<1x16x16xf32>
    tpu.vector_store %arg12[%c0_44, %c0_45, %c0_46], %119 {strides = array<i32>} : memref<2x16x16xf32, #tpu.memory_space<vmem>>, vector<1x16x16xf32>,
    %120 = vector.extract_strided_slice %113 {offsets = [16, 0], sizes = [16, 32], strides = [1, 1]} : vector<32x32xf32> to vector<16x32xf32>
    %121 = vector.extract_strided_slice %108 {offsets = [16, 0], sizes = [16, 32], strides = [1, 1]} : vector<32x32xf32> to vector<16x32xf32>
    %cst_47 = arith.constant dense<0.000000e+00> : vector<16x16xf32>
    %122 = tpu.matmul %120, %121, %cst_47 {dimension_numbers = #tpu.dot_dimension_numbers<[1], [1], [0], [0], [0, 0, 1, 0], [], []>} : vector<16x32xf32>, vector<16x32xf32>, vector<16x16xf32> -> vector<16x16xf32>
    %c1 = arith.constant 1 : index
    %c0_48 = arith.constant 0 : index
    %c0_49 = arith.constant 0 : index
    %123 = vector.load %arg12[%c1, %c0_48, %c0_49] : memref<2x16x16xf32, #tpu.memory_space<vmem>>, vector<1x16x16xf32>
    %124 = vector.shape_cast %123 : vector<1x16x16xf32> to vector<16x16xf32>
    %125 = vector.shape_cast %122 : vector<16x16xf32> to vector<1x16x16xf32>
    tpu.vector_store %arg12[%c1, %c0_48, %c0_49], %125 {strides = array<i32>} : memref<2x16x16xf32, #tpu.memory_space<vmem>>, vector<1x16x16xf32>,
    return
  }
}

</mosaic_0001>

<llo_original>
// kernel: tpu_custom_call.1
$region0: #{tpu_custom_call.1}
  #allocation0 [shape = 'u32[]', space=smem, size = 0x4, offset = 0x4, fixed_abs, tag = 'smem constant byte address 0x4 - core index']
  #allocation1 [shape = 'u32[144,128]{1,0:T(1,128)}', space=vmem, size = 0x12000, scoped, tag = 'internal scratch']
  %s0 = inlined_call_operand.vmem [shape: f32[128,16], index: 0, kind: input, shape index: {}]
  %s1 = inlined_call_operand.vmem [shape: f32[128,128], index: 1, kind: input, shape index: {}]
  %s2 = inlined_call_operand.hbm [shape: f32[128,128], index: 2, kind: input, shape index: {}]
  %s3 = inlined_call_operand.hbm [shape: f32[128,128], index: 3, kind: input, shape index: {}]
  %s4 = inlined_call_operand.hbm [shape: f32[32,128], index: 4, kind: input, shape index: {}]
  %s5 = inlined_call_operand.hbm [shape: f32[16,16], index: 5, kind: input, shape index: {}]
  %s6 = inlined_call_operand.hbm [shape: f32[16,16], index: 6, kind: input, shape index: {}]
  %s7 = inlined_call_operand.hbm [shape: f32[16,128], index: 7, kind: input, shape index: {}]
  %s8 = inlined_call_operand.hbm [shape: f32[1,128], index: 8, kind: input, shape index: {}]
  %s9 = inlined_call_operand.vmem [shape: f32[32,128], index: 9, kind: input, shape index: {}]
  %s10 = inlined_call_operand.hbm [shape: f32[32,32], index: 10, kind: input, shape index: {}]
  %s11 = inlined_call_operand.vmem [shape: f32[1,32], index: 11, kind: input, shape index: {}]
  %s12 = inlined_call_operand.hbm [shape: f32[2,16,16], index: 12, kind: output, shape index: {}]
  %s13 = sld [smem:[#allocation0]]
  $region90: #{tpu_custom_call.1} parent=0
    _
  %s15 = ssub.s32 1, %s13
  %s16 = scalar_select 0, %s15, %s13
  $region1: #{tpu_custom_call.1} parent=0
    #allocation2 [shape = 'u8[65536]{0}', space=vmem, size = 0x10000, scoped, tag = 'input window, operand 2, single buffered']
    #allocation3 [shape = 's32[1]{0}', space=sflag, size = 0x4, scoped, tag = 'scoped memory for tpu_custom_call.1']
    #allocation4 [shape = 's32[1]{0}', space=sflag, size = 0x4, scoped, tag = 'scoped memory for tpu_custom_call.1']
    #allocation5 [shape = 'u8[65536]{0}', space=vmem, size = 0x10000, scoped, tag = 'input window, operand 3, single buffered']
    #allocation6 [shape = 's32[1]{0}', space=sflag, size = 0x4, scoped, tag = 'scoped memory for tpu_custom_call.1']
    #allocation7 [shape = 'u8[16384]{0}', space=vmem, size = 0x4000, scoped, tag = 'input window, operand 4, single buffered']
    #allocation8 [shape = 'u8[8192]{0}', space=vmem, size = 0x2000, scoped, tag = 'input window, operand 5, single buffered']
    #allocation9 [shape = 's32[1]{0}', space=sflag, size = 0x4, scoped, tag = 'scoped memory for tpu_custom_call.1']
    #allocation10 [shape = 'u8[8192]{0}', space=vmem, size = 0x2000, scoped, tag = 'input window, operand 6, single buffered']
    #allocation11 [shape = 'u8[8192]{0}', space=vmem, size = 0x2000, scoped, tag = 'input window, operand 7, single buffered']
    #allocation12 [shape = 's32[1]{0}', space=sflag, size = 0x4, scoped, tag = 'scoped memory for tpu_custom_call.1']
    #allocation13 [shape = 'u8[512]{0}', space=vmem, size = 0x400, scoped, tag = 'input window, operand 8, single buffered']
    #allocation14 [shape = 'u8[16384]{0}', space=vmem, size = 0x4000, scoped, tag = 'input window, operand 10, single buffered']
    #allocation15 [shape = 's32[1]{0}', space=sflag, size = 0x4, scoped, tag = 'scoped memory for tpu_custom_call.1']
    #allocation16 [shape = 'u8[16384]{0}', space=vmem, size = 0x4000, scoped, tag = 'output window, operand 0, single buffered']
    %17 = vsyncpa [#allocation3], 0
    %18 = vsyncpa [#allocation6], 0
    %19 = vsyncpa [#allocation9], 0
    %20 = vsyncpa [#allocation12], 0
    %21 = vsyncpa [#allocation15], 0
    %22 = vsyncpa [#allocation4], 0
    // Predicated region
    $region2: #{tpu_custom_call.1} parent=1 // pred_check
      _
    $region3: #{tpu_custom_call.1} parent=1 // pred_check_branch
      %24 = sbr.rel (0) target = $region5
    $region4: #{tpu_custom_call.1} parent=1 // pred_region
      _
    $region5: #{tpu_custom_call.1} parent=1 // pred_fallthru
      _
    // Predicated region
    $region6: #{tpu_custom_call.1} parent=1 // pred_check
      _
    $region7: #{tpu_custom_call.1} parent=1 // pred_check_branch
      %26 = sbr.rel (0) target = $region9
    $region8: #{tpu_custom_call.1} parent=1 // pred_region
      _
    $region9: #{tpu_custom_call.1} parent=1 // pred_fallthru
      _
    // Predicated region
    $region10: #{tpu_custom_call.1} parent=1 // pred_check
      _
    $region11: #{tpu_custom_call.1} parent=1 // pred_check_branch
      %28 = sbr.rel (0) target = $region13
    $region12: #{tpu_custom_call.1} parent=1 // pred_region
      %s30 = ssub.s32 2048, 2048
      %31 = vsyncadd [#allocation3], %s30
      %s32 = sshll.u32 [#allocation2], 4
      %s33 = int_to_ptr.vmem [resolvable:$true] %s32
      %38 = dma.hbm_to_vmem [thread:$0]  %s2, 2048, %s33, [#allocation3], 128, 128, 8
    $region13: #{tpu_custom_call.1} parent=1 // pred_fallthru
      _
    // Predicated region
    $region14: #{tpu_custom_call.1} parent=1 // pred_check
      _
    $region15: #{tpu_custom_call.1} parent=1 // pred_check_branch
      %40 = sbr.rel (0) target = $region17
    $region16: #{tpu_custom_call.1} parent=1 // pred_region
      %s42 = ssub.s32 2048, 2048
      %43 = vsyncadd [#allocation6], %s42
      %s44 = sshll.u32 [#allocation5], 4
      %s45 = int_to_ptr.vmem [resolvable:$true] %s44
      %50 = dma.hbm_to_vmem [thread:$0]  %s3, 2048, %s45, [#allocation6], 128, 128, 8
    $region17: #{tpu_custom_call.1} parent=1 // pred_fallthru
      _
    // Predicated region
    $region18: #{tpu_custom_call.1} parent=1 // pred_check
      _
    $region19: #{tpu_custom_call.1} parent=1 // pred_check_branch
      %52 = sbr.rel (0) target = $region21
    $region20: #{tpu_custom_call.1} parent=1 // pred_region
      %s54 = ssub.s32 512, 512
      %55 = vsyncadd [#allocation6], %s54
      %s56 = sshll.u32 [#allocation7], 4
      %s57 = int_to_ptr.vmem [resolvable:$true] %s56
      %62 = dma.hbm_to_vmem [thread:$0]  %s4, 512, %s57, [#allocation6], 128, 128, 8
    $region21: #{tpu_custom_call.1} parent=1 // pred_fallthru
      _
    // Predicated region
    $region22: #{tpu_custom_call.1} parent=1 // pred_check
      _
    $region23: #{tpu_custom_call.1} parent=1 // pred_check_branch
      %64 = sbr.rel (0) target = $region25
    $region24: #{tpu_custom_call.1} parent=1 // pred_region
      %s66 = ssub.s32 256, 256
      %67 = vsyncadd [#allocation9], %s66
      %s68 = sshll.u32 [#allocation8], 4
      %s69 = int_to_ptr.vmem [resolvable:$true] %s68
      %74 = dma.hbm_to_vmem [thread:$0]  %s5, 256, %s69, [#allocation9], 128, 128, 8
    $region25: #{tpu_custom_call.1} parent=1 // pred_fallthru
      _
    // Predicated region
    $region26: #{tpu_custom_call.1} parent=1 // pred_check
      _
    $region27: #{tpu_custom_call.1} parent=1 // pred_check_branch
      %76 = sbr.rel (0) target = $region29
    $region28: #{tpu_custom_call.1} parent=1 // pred_region
      %s78 = ssub.s32 256, 256
      %79 = vsyncadd [#allocation9], %s78
      %s80 = sshll.u32 [#allocation10], 4
      %s81 = int_to_ptr.vmem [resolvable:$true] %s80
      %86 = dma.hbm_to_vmem [thread:$0]  %s6, 256, %s81, [#allocation9], 128, 128, 8
    $region29: #{tpu_custom_call.1} parent=1 // pred_fallthru
      _
    // Predicated region
    $region30: #{tpu_custom_call.1} parent=1 // pred_check
      _
    $region31: #{tpu_custom_call.1} parent=1 // pred_check_branch
      %88 = sbr.rel (0) target = $region33
    $region32: #{tpu_custom_call.1} parent=1 // pred_region
      %s90 = ssub.s32 256, 256
      %91 = vsyncadd [#allocation12], %s90
      %s92 = sshll.u32 [#allocation11], 4
      %s93 = int_to_ptr.vmem [resolvable:$true] %s92
      %98 = dma.hbm_to_vmem [thread:$0]  %s7, 256, %s93, [#allocation12], 128, 128, 8
    $region33: #{tpu_custom_call.1} parent=1 // pred_fallthru
      _
    // Predicated region
    $region34: #{tpu_custom_call.1} parent=1 // pred_check
      _
    $region35: #{tpu_custom_call.1} parent=1 // pred_check_branch
      %100 = sbr.rel (0) target = $region37
    $region36: #{tpu_custom_call.1} parent=1 // pred_region
      %s102 = ssub.s32 16, 16
      %103 = vsyncadd [#allocation12], %s102
      %s105 = sshll.u32 [#allocation13], 4
      %s106 = int_to_ptr.vmem [resolvable:$true] %s105
      %108 = dma.hbm_to_vmem [thread:$0]  %s8, 16, %s106, [#allocation12]
    $region37: #{tpu_custom_call.1} parent=1 // pred_fallthru
      _
    // Predicated region
    $region38: #{tpu_custom_call.1} parent=1 // pred_check
      _
    $region39: #{tpu_custom_call.1} parent=1 // pred_check_branch
      %110 = sbr.rel (0) target = $region41
    $region40: #{tpu_custom_call.1} parent=1 // pred_region
      _
    $region41: #{tpu_custom_call.1} parent=1 // pred_fallthru
      _
    // Predicated region
    $region42: #{tpu_custom_call.1} parent=1 // pred_check
      _
    $region43: #{tpu_custom_call.1} parent=1 // pred_check_branch
      %112 = sbr.rel (0) target = $region45
    $region44: #{tpu_custom_call.1} parent=1 // pred_region
      %s114 = ssub.s32 512, 512
      %115 = vsyncadd [#allocation15], %s114
      %s116 = sshll.u32 [#allocation14], 4
      %s117 = int_to_ptr.vmem [resolvable:$true] %s116
      %122 = dma.hbm_to_vmem [thread:$0]  %s10, 512, %s117, [#allocation15], 128, 128, 8
    $region45: #{tpu_custom_call.1} parent=1 // pred_fallthru
      _
    // Predicated region
    $region46: #{tpu_custom_call.1} parent=1 // pred_check
      _
    $region47: #{tpu_custom_call.1} parent=1 // pred_check_branch
      %124 = sbr.rel (0) target = $region49
    $region48: #{tpu_custom_call.1} parent=1 // pred_region
      _
    $region49: #{tpu_custom_call.1} parent=1 // pred_fallthru
      _
    // Predicated region
    $region50: #{tpu_custom_call.1} parent=1 // pred_check
      _
    $region51: #{tpu_custom_call.1} parent=1 // pred_check_branch
      %126 = sbr.rel (0) target = $region53
    $region52: #{tpu_custom_call.1} parent=1 // pred_region
      %127 = dma.done [#allocation3], 2048
    $region53: #{tpu_custom_call.1} parent=1 // pred_fallthru
      _
    // Predicated region
    $region54: #{tpu_custom_call.1} parent=1 // pred_check
      _
    $region55: #{tpu_custom_call.1} parent=1 // pred_check_branch
      %129 = sbr.rel (0) target = $region57
    $region56: #{tpu_custom_call.1} parent=1 // pred_region
      %130 = dma.done [#allocation6], 2048
    $region57: #{tpu_custom_call.1} parent=1 // pred_fallthru
      _
    // Predicated region
    $region58: #{tpu_custom_call.1} parent=1 // pred_check
      _
    $region59: #{tpu_custom_call.1} parent=1 // pred_check_branch
      %132 = sbr.rel (0) target = $region61
    $region60: #{tpu_custom_call.1} parent=1 // pred_region
      %133 = dma.done [#allocation6], 512
    $region61: #{tpu_custom_call.1} parent=1 // pred_fallthru
      _
    // Predicated region
    $region62: #{tpu_custom_call.1} parent=1 // pred_check
      _
    $region63: #{tpu_custom_call.1} parent=1 // pred_check_branch
      %135 = sbr.rel (0) target = $region65
    $region64: #{tpu_custom_call.1} parent=1 // pred_region
      %136 = dma.done [#allocation9], 256
    $region65: #{tpu_custom_call.1} parent=1 // pred_fallthru
      _
    // Predicated region
    $region66: #{tpu_custom_call.1} parent=1 // pred_check
      _
    $region67: #{tpu_custom_call.1} parent=1 // pred_check_branch
      %138 = sbr.rel (0) target = $region69
    $region68: #{tpu_custom_call.1} parent=1 // pred_region
      %139 = dma.done [#allocation9], 256
    $region69: #{tpu_custom_call.1} parent=1 // pred_fallthru
      _
    // Predicated region
    $region70: #{tpu_custom_call.1} parent=1 // pred_check
      _
    $region71: #{tpu_custom_call.1} parent=1 // pred_check_branch
      %141 = sbr.rel (0) target = $region73
    $region72: #{tpu_custom_call.1} parent=1 // pred_region
      %142 = dma.done [#allocation12], 256
    $region73: #{tpu_custom_call.1} parent=1 // pred_fallthru
      _
    // Predicated region
    $region74: #{tpu_custom_call.1} parent=1 // pred_check
      _
    $region75: #{tpu_custom_call.1} parent=1 // pred_check_branch
      %144 = sbr.rel (0) target = $region77
    $region76: #{tpu_custom_call.1} parent=1 // pred_region
      %145 = dma.done [#allocation12], 16
    $region77: #{tpu_custom_call.1} parent=1 // pred_fallthru
      _
    // Predicated region
    $region78: #{tpu_custom_call.1} parent=1 // pred_check
      _
    $region79: #{tpu_custom_call.1} parent=1 // pred_check_branch
      %147 = sbr.rel (0) target = $region81
    $region80: #{tpu_custom_call.1} parent=1 // pred_region
      %148 = dma.done [#allocation15], 512
    $region81: #{tpu_custom_call.1} parent=1 // pred_fallthru
      _
    %v149 = vld [vmem:[%s0] sm:$0xff]
    %v150 = vld [vmem:[%s0 + $0x8] sm:$0xff]
    %v151 = vld [vmem:[%s0 + $0x10] sm:$0xff]
    %v152 = vld [vmem:[%s0 + $0x18] sm:$0xff]
    %v153 = vld [vmem:[%s0 + $0x20] sm:$0xff]
    %v154 = vld [vmem:[%s0 + $0x28] sm:$0xff]
    %v155 = vld [vmem:[%s0 + $0x30] sm:$0xff]
    %v156 = vld [vmem:[%s0 + $0x38] sm:$0xff]
    %v157 = vld [vmem:[%s0 + $0x40] sm:$0xff]
    %v158 = vld [vmem:[%s0 + $0x48] sm:$0xff]
    %v159 = vld [vmem:[%s0 + $0x50] sm:$0xff]
    %v160 = vld [vmem:[%s0 + $0x58] sm:$0xff]
    %v161 = vld [vmem:[%s0 + $0x60] sm:$0xff]
    %v162 = vld [vmem:[%s0 + $0x68] sm:$0xff]
    %v163 = vld [vmem:[%s0 + $0x70] sm:$0xff]
    %v164 = vld [vmem:[%s0 + $0x78] sm:$0xff]
    %v165 = vld [vmem:[#allocation2] sm:$0xff]
    %v166 = vld [vmem:[#allocation2 + $0x8] sm:$0xff]
    %v167 = vld [vmem:[#allocation2 + $0x10] sm:$0xff]
    %v168 = vld [vmem:[#allocation2 + $0x18] sm:$0xff]
    %v169 = vld [vmem:[#allocation2 + $0x20] sm:$0xff]
    %v170 = vld [vmem:[#allocation2 + $0x28] sm:$0xff]
    %v171 = vld [vmem:[#allocation2 + $0x30] sm:$0xff]
    %v172 = vld [vmem:[#allocation2 + $0x38] sm:$0xff]
    %v173 = vld [vmem:[#allocation2 + $0x40] sm:$0xff]
    %v174 = vld [vmem:[#allocation2 + $0x48] sm:$0xff]
    %v175 = vld [vmem:[#allocation2 + $0x50] sm:$0xff]
    %v176 = vld [vmem:[#allocation2 + $0x58] sm:$0xff]
    %v177 = vld [vmem:[#allocation2 + $0x60] sm:$0xff]
    %v178 = vld [vmem:[#allocation2 + $0x68] sm:$0xff]
    %v179 = vld [vmem:[#allocation2 + $0x70] sm:$0xff]
    %v180 = vld [vmem:[#allocation2 + $0x78] sm:$0xff]
    %v181 = vld [vmem:[%s1] sm:$0xff]
    %v182 = vld [vmem:[%s1 + $0x8] sm:$0xff]
    %v183 = vld [vmem:[%s1 + $0x10] sm:$0xff]
    %v184 = vld [vmem:[%s1 + $0x18] sm:$0xff]
    %v185 = vld [vmem:[%s1 + $0x20] sm:$0xff]
    %v186 = vld [vmem:[%s1 + $0x28] sm:$0xff]
    %v187 = vld [vmem:[%s1 + $0x30] sm:$0xff]
    %v188 = vld [vmem:[%s1 + $0x38] sm:$0xff]
    %v189 = vld [vmem:[%s1 + $0x40] sm:$0xff]
    %v190 = vld [vmem:[%s1 + $0x48] sm:$0xff]
    %v191 = vld [vmem:[%s1 + $0x50] sm:$0xff]
    %v192 = vld [vmem:[%s1 + $0x58] sm:$0xff]
    %v193 = vld [vmem:[%s1 + $0x60] sm:$0xff]
    %v194 = vld [vmem:[%s1 + $0x68] sm:$0xff]
    %v195 = vld [vmem:[%s1 + $0x70] sm:$0xff]
    %v196 = vld [vmem:[%s1 + $0x78] sm:$0xff]
    %v197 = vmul.f32 %v181, %v165
    %v198 = vmul.f32 %v182, %v166
    %v199 = vmul.f32 %v183, %v167
    %v200 = vmul.f32 %v184, %v168
    %v201 = vmul.f32 %v185, %v169
    %v202 = vmul.f32 %v186, %v170
    %v203 = vmul.f32 %v187, %v171
    %v204 = vmul.f32 %v188, %v172
    %v205 = vmul.f32 %v189, %v173
    %v206 = vmul.f32 %v190, %v174
    %v207 = vmul.f32 %v191, %v175
    %v208 = vmul.f32 %v192, %v176
    %v209 = vmul.f32 %v193, %v177
    %v210 = vmul.f32 %v194, %v178
    %v211 = vmul.f32 %v195, %v179
    %v212 = vmul.f32 %v196, %v180
    %213 = vadd.xlane.f32.xlu0 %v197
    %v214 = vpop.xlane.xlu0 %213
    %215 = vadd.xlane.f32.xlu0 %v198
    %v216 = vpop.xlane.xlu0 %215
    %217 = vadd.xlane.f32.xlu0 %v199
    %v218 = vpop.xlane.xlu0 %217
    %219 = vadd.xlane.f32.xlu0 %v200
    %v220 = vpop.xlane.xlu0 %219
    %221 = vadd.xlane.f32.xlu0 %v201
    %v222 = vpop.xlane.xlu0 %221
    %223 = vadd.xlane.f32.xlu0 %v202
    %v224 = vpop.xlane.xlu0 %223
    %225 = vadd.xlane.f32.xlu0 %v203
    %v226 = vpop.xlane.xlu0 %225
    %227 = vadd.xlane.f32.xlu0 %v204
    %v228 = vpop.xlane.xlu0 %227
    %229 = vadd.xlane.f32.xlu0 %v205
    %v230 = vpop.xlane.xlu0 %229
    %231 = vadd.xlane.f32.xlu0 %v206
    %v232 = vpop.xlane.xlu0 %231
    %233 = vadd.xlane.f32.xlu0 %v207
    %v234 = vpop.xlane.xlu0 %233
    %235 = vadd.xlane.f32.xlu0 %v208
    %v236 = vpop.xlane.xlu0 %235
    %237 = vadd.xlane.f32.xlu0 %v209
    %v238 = vpop.xlane.xlu0 %237
    %239 = vadd.xlane.f32.xlu0 %v210
    %v240 = vpop.xlane.xlu0 %239
    %241 = vadd.xlane.f32.xlu0 %v211
    %v242 = vpop.xlane.xlu0 %241
    %243 = vadd.xlane.f32.xlu0 %v212
    %v244 = vpop.xlane.xlu0 %243
    %v245 = vadd.f32 %v214, 1e-06
    %v246 = vadd.f32 %v216, 1e-06
    %v247 = vadd.f32 %v218, 1e-06
    %v248 = vadd.f32 %v220, 1e-06
    %v249 = vadd.f32 %v222, 1e-06
    %v250 = vadd.f32 %v224, 1e-06
    %v251 = vadd.f32 %v226, 1e-06
    %v252 = vadd.f32 %v228, 1e-06
    %v253 = vadd.f32 %v230, 1e-06
    %v254 = vadd.f32 %v232, 1e-06
    %v255 = vadd.f32 %v234, 1e-06
    %v256 = vadd.f32 %v236, 1e-06
    %v257 = vadd.f32 %v238, 1e-06
    %v258 = vadd.f32 %v240, 1e-06
    %v259 = vadd.f32 %v242, 1e-06
    %v260 = vadd.f32 %v244, 1e-06
    %v261 = vrcp.pop %v245
    %v262 = vmul.f32 %v197, %v261
    %v263 = vrcp.pop %v246
    %v264 = vmul.f32 %v198, %v263
    %v265 = vrcp.pop %v247
    %v266 = vmul.f32 %v199, %v265
    %v267 = vrcp.pop %v248
    %v268 = vmul.f32 %v200, %v267
    %v269 = vrcp.pop %v249
    %v270 = vmul.f32 %v201, %v269
    %v271 = vrcp.pop %v250
    %v272 = vmul.f32 %v202, %v271
    %v273 = vrcp.pop %v251
    %v274 = vmul.f32 %v203, %v273
    %v275 = vrcp.pop %v252
    %v276 = vmul.f32 %v204, %v275
    %v277 = vrcp.pop %v253
    %v278 = vmul.f32 %v205, %v277
    %v279 = vrcp.pop %v254
    %v280 = vmul.f32 %v206, %v279
    %v281 = vrcp.pop %v255
    %v282 = vmul.f32 %v207, %v281
    %v283 = vrcp.pop %v256
    %v284 = vmul.f32 %v208, %v283
    %v285 = vrcp.pop %v257
    %v286 = vmul.f32 %v209, %v285
    %v287 = vrcp.pop %v258
    %v288 = vmul.f32 %v210, %v287
    %v289 = vrcp.pop %v259
    %v290 = vmul.f32 %v211, %v289
    %v291 = vrcp.pop %v260
    %v292 = vmul.f32 %v212, %v291
    %vm293 = vcmask 130048
    %v295 = vsel %vm293, %v149, 0
    %v298 = vsel %vm293, %v150, 0
    %v301 = vsel %vm293, %v151, 0
    %v304 = vsel %vm293, %v152, 0
    %v307 = vsel %vm293, %v153, 0
    %v310 = vsel %vm293, %v154, 0
    %v313 = vsel %vm293, %v155, 0
    %v316 = vsel %vm293, %v156, 0
    %v319 = vsel %vm293, %v157, 0
    %v322 = vsel %vm293, %v158, 0
    %v325 = vsel %vm293, %v159, 0
    %v328 = vsel %vm293, %v160, 0
    %v331 = vsel %vm293, %v161, 0
    %v334 = vsel %vm293, %v162, 0
    %v337 = vsel %vm293, %v163, 0
    %v340 = vsel %vm293, %v164, 0
    %342 = vmatprep.subr.mxu0 0.0
    %343 = vmatpush1.xpose.msra.mxu0 %v340
    %344 = vmatprep.subr.mxu0 0.0
    %345 = vmatpush1.xpose.msra.mxu0 %v337
    %346 = vmatprep.subr.mxu0 0.0
    %347 = vmatpush1.xpose.msra.mxu0 %v334
    %348 = vmatprep.subr.mxu0 0.0
    %349 = vmatpush1.xpose.msra.mxu0 %v331
    %350 = vmatprep.subr.mxu0 0.0
    %351 = vmatpush1.xpose.msra.mxu0 %v328
    %352 = vmatprep.subr.mxu0 0.0
    %353 = vmatpush1.xpose.msra.mxu0 %v325
    %354 = vmatprep.subr.mxu0 0.0
    %355 = vmatpush1.xpose.msra.mxu0 %v322
    %356 = vmatprep.subr.mxu0 0.0
    %357 = vmatpush1.xpose.msra.mxu0 %v319
    %358 = vmatprep.subr.mxu0 0.0
    %359 = vmatpush1.xpose.msra.mxu0 %v316
    %360 = vmatprep.subr.mxu0 0.0
    %361 = vmatpush1.xpose.msra.mxu0 %v313
    %362 = vmatprep.subr.mxu0 0.0
    %363 = vmatpush1.xpose.msra.mxu0 %v310
    %364 = vmatprep.subr.mxu0 0.0
    %365 = vmatpush1.xpose.msra.mxu0 %v307
    %366 = vmatprep.subr.mxu0 0.0
    %367 = vmatpush1.xpose.msra.mxu0 %v304
    %368 = vmatprep.subr.mxu0 0.0
    %369 = vmatpush1.xpose.msra.mxu0 %v301
    %370 = vmatprep.subr.mxu0 0.0
    %371 = vmatpush1.xpose.msra.mxu0 %v298
    %372 = vmatprep.subr.mxu0 0.0
    %373 = vmatpush1.xpose.msra.mxu0 %v295
    %374 = vmatprep.subr.mxu0 0.0
    %375 = vmatpush2.xpose.msra.mxu0 0.0
    %376 = vmatprep.subr.mxu0 0.0
    %377 = vmatpush2.xpose.msra.mxu0 0.0
    %378 = vmatprep.subr.mxu0 0.0
    %379 = vmatpush2.xpose.msra.mxu0 0.0
    %380 = vmatprep.subr.mxu0 0.0
    %381 = vmatpush2.xpose.msra.mxu0 0.0
    %382 = vmatprep.subr.mxu0 0.0
    %383 = vmatpush2.xpose.msra.mxu0 0.0
    %384 = vmatprep.subr.mxu0 0.0
    %385 = vmatpush2.xpose.msra.mxu0 0.0
    %386 = vmatprep.subr.mxu0 0.0
    %387 = vmatpush2.xpose.msra.mxu0 0.0
    %388 = vmatprep.subr.mxu0 0.0
    %389 = vmatpush2.xpose.msra.mxu0 0.0
    %390 = vmatprep.subr.mxu0 0.0
    %391 = vmatpush2.xpose.msra.mxu0 0.0
    %392 = vmatprep.subr.mxu0 0.0
    %393 = vmatpush2.xpose.msra.mxu0 0.0
    %394 = vmatprep.subr.mxu0 0.0
    %395 = vmatpush2.xpose.msra.mxu0 0.0
    %396 = vmatprep.subr.mxu0 0.0
    %397 = vmatpush2.xpose.msra.mxu0 0.0
    %398 = vmatprep.subr.mxu0 0.0
    %399 = vmatpush2.xpose.msra.mxu0 0.0
    %400 = vmatprep.subr.mxu0 0.0
    %401 = vmatpush2.xpose.msra.mxu0 0.0
    %402 = vmatprep.subr.mxu0 0.0
    %403 = vmatpush2.xpose.msra.mxu0 0.0
    %404 = vmatprep.subr.mxu0 0.0
    %405 = vmatpush2.xpose.msra.mxu0 0.0
    %406 = vmatprep.mubr.f32.mxu0 0.0
    %407 = vmatmul.mubr.f32.gmra.mxu0 %v295
    %v408 = vpop.f32.mrf.mxu0
    %v409 = vadd.f32 0.0, %v408
    %v410 = vpop.f32.mrf.mxu0
    %411 = vmatprep.mubr.f32.mxu0 0.0
    %412 = vmatmul.mubr.f32.gmra.mxu0 %v298
    %v413 = vpop.f32.mrf.mxu0
    %v414 = vadd.f32 0.0, %v413
    %v415 = vpop.f32.mrf.mxu0
    %416 = vmatprep.mubr.f32.mxu0 0.0
    %417 = vmatmul.mubr.f32.gmra.mxu0 %v301
    %v418 = vpop.f32.mrf.mxu0
    %v419 = vadd.f32 0.0, %v418
    %v420 = vpop.f32.mrf.mxu0
    %421 = vmatprep.mubr.f32.mxu0 0.0
    %422 = vmatmul.mubr.f32.gmra.mxu0 %v304
    %v423 = vpop.f32.mrf.mxu0
    %v424 = vadd.f32 0.0, %v423
    %v425 = vpop.f32.mrf.mxu0
    %426 = vmatprep.mubr.f32.mxu0 0.0
    %427 = vmatmul.mubr.f32.gmra.mxu0 %v307
    %v428 = vpop.f32.mrf.mxu0
    %v429 = vadd.f32 0.0, %v428
    %v430 = vpop.f32.mrf.mxu0
    %431 = vmatprep.mubr.f32.mxu0 0.0
    %432 = vmatmul.mubr.f32.gmra.mxu0 %v310
    %v433 = vpop.f32.mrf.mxu0
    %v434 = vadd.f32 0.0, %v433
    %v435 = vpop.f32.mrf.mxu0
    %436 = vmatprep.mubr.f32.mxu0 0.0
    %437 = vmatmul.mubr.f32.gmra.mxu0 %v313
    %v438 = vpop.f32.mrf.mxu0
    %v439 = vadd.f32 0.0, %v438
    %v440 = vpop.f32.mrf.mxu0
    %441 = vmatprep.mubr.f32.mxu0 0.0
    %442 = vmatmul.mubr.f32.gmra.mxu0 %v316
    %v443 = vpop.f32.mrf.mxu0
    %v444 = vadd.f32 0.0, %v443
    %v445 = vpop.f32.mrf.mxu0
    %446 = vmatprep.mubr.f32.mxu0 0.0
    %447 = vmatmul.mubr.f32.gmra.mxu0 %v319
    %v448 = vpop.f32.mrf.mxu0
    %v449 = vadd.f32 0.0, %v448
    %v450 = vpop.f32.mrf.mxu0
    %451 = vmatprep.mubr.f32.mxu0 0.0
    %452 = vmatmul.mubr.f32.gmra.mxu0 %v322
    %v453 = vpop.f32.mrf.mxu0
    %v454 = vadd.f32 0.0, %v453
    %v455 = vpop.f32.mrf.mxu0
    %456 = vmatprep.mubr.f32.mxu0 0.0
    %457 = vmatmul.mubr.f32.gmra.mxu0 %v325
    %v458 = vpop.f32.mrf.mxu0
    %v459 = vadd.f32 0.0, %v458
    %v460 = vpop.f32.mrf.mxu0
    %461 = vmatprep.mubr.f32.mxu0 0.0
    %462 = vmatmul.mubr.f32.gmra.mxu0 %v328
    %v463 = vpop.f32.mrf.mxu0
    %v464 = vadd.f32 0.0, %v463
    %v465 = vpop.f32.mrf.mxu0
    %466 = vmatprep.mubr.f32.mxu0 0.0
    %467 = vmatmul.mubr.f32.gmra.mxu0 %v331
    %v468 = vpop.f32.mrf.mxu0
    %v469 = vadd.f32 0.0, %v468
    %v470 = vpop.f32.mrf.mxu0
    %471 = vmatprep.mubr.f32.mxu0 0.0
    %472 = vmatmul.mubr.f32.gmra.mxu0 %v334
    %v473 = vpop.f32.mrf.mxu0
    %v474 = vadd.f32 0.0, %v473
    %v475 = vpop.f32.mrf.mxu0
    %476 = vmatprep.mubr.f32.mxu0 0.0
    %477 = vmatmul.mubr.f32.gmra.mxu0 %v337
    %v478 = vpop.f32.mrf.mxu0
    %v479 = vadd.f32 0.0, %v478
    %v480 = vpop.f32.mrf.mxu0
    %481 = vmatprep.mubr.f32.mxu0 0.0
    %482 = vmatmul.mubr.f32.gmra.mxu0 %v340
    %v483 = vpop.f32.mrf.mxu0
    %v484 = vadd.f32 0.0, %v483
    %v485 = vpop.f32.mrf.mxu0
    %486 = vdwg.mxu0
    %v487 = vmul.f32 %v409, %v165
    %v488 = vmul.f32 %v414, %v166
    %v489 = vmul.f32 %v419, %v167
    %v490 = vmul.f32 %v424, %v168
    %v491 = vmul.f32 %v429, %v169
    %v492 = vmul.f32 %v434, %v170
    %v493 = vmul.f32 %v439, %v171
    %v494 = vmul.f32 %v444, %v172
    %v495 = vmul.f32 %v449, %v173
    %v496 = vmul.f32 %v454, %v174
    %v497 = vmul.f32 %v459, %v175
    %v498 = vmul.f32 %v464, %v176
    %v499 = vmul.f32 %v469, %v177
    %v500 = vmul.f32 %v474, %v178
    %v501 = vmul.f32 %v479, %v179
    %v502 = vmul.f32 %v484, %v180
    %503 = vadd.xlane.f32.xlu0 %v487
    %v504 = vpop.xlane.xlu0 %503
    %505 = vadd.xlane.f32.xlu0 %v488
    %v506 = vpop.xlane.xlu0 %505
    %507 = vadd.xlane.f32.xlu0 %v489
    %v508 = vpop.xlane.xlu0 %507
    %509 = vadd.xlane.f32.xlu0 %v490
    %v510 = vpop.xlane.xlu0 %509
    %511 = vadd.xlane.f32.xlu0 %v491
    %v512 = vpop.xlane.xlu0 %511
    %513 = vadd.xlane.f32.xlu0 %v492
    %v514 = vpop.xlane.xlu0 %513
    %515 = vadd.xlane.f32.xlu0 %v493
    %v516 = vpop.xlane.xlu0 %515
    %517 = vadd.xlane.f32.xlu0 %v494
    %v518 = vpop.xlane.xlu0 %517
    %519 = vadd.xlane.f32.xlu0 %v495
    %v520 = vpop.xlane.xlu0 %519
    %521 = vadd.xlane.f32.xlu0 %v496
    %v522 = vpop.xlane.xlu0 %521
    %523 = vadd.xlane.f32.xlu0 %v497
    %v524 = vpop.xlane.xlu0 %523
    %525 = vadd.xlane.f32.xlu0 %v498
    %v526 = vpop.xlane.xlu0 %525
    %527 = vadd.xlane.f32.xlu0 %v499
    %v528 = vpop.xlane.xlu0 %527
    %529 = vadd.xlane.f32.xlu0 %v500
    %v530 = vpop.xlane.xlu0 %529
    %531 = vadd.xlane.f32.xlu0 %v501
    %v532 = vpop.xlane.xlu0 %531
    %533 = vadd.xlane.f32.xlu0 %v502
    %v534 = vpop.xlane.xlu0 %533
    %v535 = vadd.f32 %v504, 1e-06
    %v536 = vadd.f32 %v506, 1e-06
    %v537 = vadd.f32 %v508, 1e-06
    %v538 = vadd.f32 %v510, 1e-06
    %v539 = vadd.f32 %v512, 1e-06
    %v540 = vadd.f32 %v514, 1e-06
    %v541 = vadd.f32 %v516, 1e-06
    %v542 = vadd.f32 %v518, 1e-06
    %v543 = vadd.f32 %v520, 1e-06
    %v544 = vadd.f32 %v522, 1e-06
    %v545 = vadd.f32 %v524, 1e-06
    %v546 = vadd.f32 %v526, 1e-06
    %v547 = vadd.f32 %v528, 1e-06
    %v548 = vadd.f32 %v530, 1e-06
    %v549 = vadd.f32 %v532, 1e-06
    %v550 = vadd.f32 %v534, 1e-06
    %v551 = vrcp.pop %v535
    %v552 = vmul.f32 %v487, %v551
    %v553 = vrcp.pop %v536
    %v554 = vmul.f32 %v488, %v553
    %v555 = vrcp.pop %v537
    %v556 = vmul.f32 %v489, %v555
    %v557 = vrcp.pop %v538
    %v558 = vmul.f32 %v490, %v557
    %v559 = vrcp.pop %v539
    %v560 = vmul.f32 %v491, %v559
    %v561 = vrcp.pop %v540
    %v562 = vmul.f32 %v492, %v561
    %v563 = vrcp.pop %v541
    %v564 = vmul.f32 %v493, %v563
    %v565 = vrcp.pop %v542
    %v566 = vmul.f32 %v494, %v565
    %v567 = vrcp.pop %v543
    %v568 = vmul.f32 %v495, %v567
    %v569 = vrcp.pop %v544
    %v570 = vmul.f32 %v496, %v569
    %v571 = vrcp.pop %v545
    %v572 = vmul.f32 %v497, %v571
    %v573 = vrcp.pop %v546
    %v574 = vmul.f32 %v498, %v573
    %v575 = vrcp.pop %v547
    %v576 = vmul.f32 %v499, %v575
    %v577 = vrcp.pop %v548
    %v578 = vmul.f32 %v500, %v577
    %v579 = vrcp.pop %v549
    %v580 = vmul.f32 %v501, %v579
    %v581 = vrcp.pop %v550
    %v582 = vmul.f32 %v502, %v581
    %v583 = vld [vmem:[#allocation8] sm:$0xff]
    %v584 = vld [vmem:[#allocation8 + $0x8] sm:$0xff]
    %585 = vmatprep.subr.mxu0 0.0
    %586 = vmatpush1.msra.mxu0 0.0
    %587 = vmatprep.subr.mxu0 0.0
    %588 = vmatpush1.msra.mxu0 0.0
    %589 = vmatprep.subr.mxu0 0.0
    %590 = vmatpush1.msra.mxu0 0.0
    %591 = vmatprep.subr.mxu0 0.0
    %592 = vmatpush1.msra.mxu0 0.0
    %593 = vmatprep.subr.mxu0 0.0
    %594 = vmatpush1.msra.mxu0 0.0
    %595 = vmatprep.subr.mxu0 0.0
    %596 = vmatpush1.msra.mxu0 0.0
    %597 = vmatprep.subr.mxu0 0.0
    %598 = vmatpush1.msra.mxu0 0.0
    %599 = vmatprep.subr.mxu0 0.0
    %600 = vmatpush1.msra.mxu0 0.0
    %601 = vmatprep.subr.mxu0 0.0
    %602 = vmatpush1.msra.mxu0 0.0
    %603 = vmatprep.subr.mxu0 0.0
    %604 = vmatpush1.msra.mxu0 0.0
    %605 = vmatprep.subr.mxu0 0.0
    %606 = vmatpush1.msra.mxu0 0.0
    %607 = vmatprep.subr.mxu0 0.0
    %608 = vmatpush1.msra.mxu0 0.0
    %609 = vmatprep.subr.mxu0 0.0
    %610 = vmatpush1.msra.mxu0 0.0
    %611 = vmatprep.subr.mxu0 0.0
    %612 = vmatpush1.msra.mxu0 0.0
    %613 = vmatprep.subr.mxu0 0.0
    %614 = vmatpush1.msra.mxu0 %v584
    %615 = vmatprep.subr.mxu0 0.0
    %616 = vmatpush1.msra.mxu0 %v583
    %617 = vmatprep.subr.mxu0 0.0
    %618 = vmatpush2.msra.mxu0 0.0
    %619 = vmatprep.subr.mxu0 0.0
    %620 = vmatpush2.msra.mxu0 0.0
    %621 = vmatprep.subr.mxu0 0.0
    %622 = vmatpush2.msra.mxu0 0.0
    %623 = vmatprep.subr.mxu0 0.0
    %624 = vmatpush2.msra.mxu0 0.0
    %625 = vmatprep.subr.mxu0 0.0
    %626 = vmatpush2.msra.mxu0 0.0
    %627 = vmatprep.subr.mxu0 0.0
    %628 = vmatpush2.msra.mxu0 0.0
    %629 = vmatprep.subr.mxu0 0.0
    %630 = vmatpush2.msra.mxu0 0.0
    %631 = vmatprep.subr.mxu0 0.0
    %632 = vmatpush2.msra.mxu0 0.0
    %633 = vmatprep.subr.mxu0 0.0
    %634 = vmatpush2.msra.mxu0 0.0
    %635 = vmatprep.subr.mxu0 0.0
    %636 = vmatpush2.msra.mxu0 0.0
    %637 = vmatprep.subr.mxu0 0.0
    %638 = vmatpush2.msra.mxu0 0.0
    %639 = vmatprep.subr.mxu0 0.0
    %640 = vmatpush2.msra.mxu0 0.0
    %641 = vmatprep.subr.mxu0 0.0
    %642 = vmatpush2.msra.mxu0 0.0
    %643 = vmatprep.subr.mxu0 0.0
    %644 = vmatpush2.msra.mxu0 0.0
    %645 = vmatprep.subr.mxu0 0.0
    %646 = vmatpush2.msra.mxu0 0.0
    %647 = vmatprep.subr.mxu0 0.0
    %648 = vmatpush2.msra.mxu0 0.0
    %649 = vmatprep.mubr.f32.mxu0 0.0
    %650 = vmatmul.mubr.f32.gmra.mxu0 %v295
    %v651 = vpop.f32.mrf.mxu0
    %v652 = vadd.f32 0.0, %v651
    %v653 = vpop.f32.mrf.mxu0
    %654 = vmatprep.mubr.f32.mxu0 0.0
    %655 = vmatmul.mubr.f32.gmra.mxu0 %v298
    %v656 = vpop.f32.mrf.mxu0
    %v657 = vadd.f32 0.0, %v656
    %v658 = vpop.f32.mrf.mxu0
    %659 = vmatprep.mubr.f32.mxu0 0.0
    %660 = vmatmul.mubr.f32.gmra.mxu0 %v301
    %v661 = vpop.f32.mrf.mxu0
    %v662 = vadd.f32 0.0, %v661
    %v663 = vpop.f32.mrf.mxu0
    %664 = vmatprep.mubr.f32.mxu0 0.0
    %665 = vmatmul.mubr.f32.gmra.mxu0 %v304
    %v666 = vpop.f32.mrf.mxu0
    %v667 = vadd.f32 0.0, %v666
    %v668 = vpop.f32.mrf.mxu0
    %669 = vmatprep.mubr.f32.mxu0 0.0
    %670 = vmatmul.mubr.f32.gmra.mxu0 %v307
    %v671 = vpop.f32.mrf.mxu0
    %v672 = vadd.f32 0.0, %v671
    %v673 = vpop.f32.mrf.mxu0
    %674 = vmatprep.mubr.f32.mxu0 0.0
    %675 = vmatmul.mubr.f32.gmra.mxu0 %v310
    %v676 = vpop.f32.mrf.mxu0
    %v677 = vadd.f32 0.0, %v676
    %v678 = vpop.f32.mrf.mxu0
    %679 = vmatprep.mubr.f32.mxu0 0.0
    %680 = vmatmul.mubr.f32.gmra.mxu0 %v313
    %v681 = vpop.f32.mrf.mxu0
    %v682 = vadd.f32 0.0, %v681
    %v683 = vpop.f32.mrf.mxu0
    %684 = vmatprep.mubr.f32.mxu0 0.0
    %685 = vmatmul.mubr.f32.gmra.mxu0 %v316
    %v686 = vpop.f32.mrf.mxu0
    %v687 = vadd.f32 0.0, %v686
    %v688 = vpop.f32.mrf.mxu0
    %689 = vmatprep.mubr.f32.mxu0 0.0
    %690 = vmatmul.mubr.f32.gmra.mxu0 %v319
    %v691 = vpop.f32.mrf.mxu0
    %v692 = vadd.f32 0.0, %v691
    %v693 = vpop.f32.mrf.mxu0
    %694 = vmatprep.mubr.f32.mxu0 0.0
    %695 = vmatmul.mubr.f32.gmra.mxu0 %v322
    %v696 = vpop.f32.mrf.mxu0
    %v697 = vadd.f32 0.0, %v696
    %v698 = vpop.f32.mrf.mxu0
    %699 = vmatprep.mubr.f32.mxu0 0.0
    %700 = vmatmul.mubr.f32.gmra.mxu0 %v325
    %v701 = vpop.f32.mrf.mxu0
    %v702 = vadd.f32 0.0, %v701
    %v703 = vpop.f32.mrf.mxu0
    %704 = vmatprep.mubr.f32.mxu0 0.0
    %705 = vmatmul.mubr.f32.gmra.mxu0 %v328
    %v706 = vpop.f32.mrf.mxu0
    %v707 = vadd.f32 0.0, %v706
    %v708 = vpop.f32.mrf.mxu0
    %709 = vmatprep.mubr.f32.mxu0 0.0
    %710 = vmatmul.mubr.f32.gmra.mxu0 %v331
    %v711 = vpop.f32.mrf.mxu0
    %v712 = vadd.f32 0.0, %v711
    %v713 = vpop.f32.mrf.mxu0
    %714 = vmatprep.mubr.f32.mxu0 0.0
    %715 = vmatmul.mubr.f32.gmra.mxu0 %v334
    %v716 = vpop.f32.mrf.mxu0
    %v717 = vadd.f32 0.0, %v716
    %v718 = vpop.f32.mrf.mxu0
    %719 = vmatprep.mubr.f32.mxu0 0.0
    %720 = vmatmul.mubr.f32.gmra.mxu0 %v337
    %v721 = vpop.f32.mrf.mxu0
    %v722 = vadd.f32 0.0, %v721
    %v723 = vpop.f32.mrf.mxu0
    %724 = vmatprep.mubr.f32.mxu0 0.0
    %725 = vmatmul.mubr.f32.gmra.mxu0 %v340
    %v726 = vpop.f32.mrf.mxu0
    %v727 = vadd.f32 0.0, %v726
    %v728 = vpop.f32.mrf.mxu0
    %729 = vdwg.mxu0
    %v730 = vld [vmem:[#allocation10] sm:$0xff]
    %v731 = vld [vmem:[#allocation10 + $0x8] sm:$0xff]
    %732 = vmatprep.subr.mxu0 0.0
    %733 = vmatpush1.msra.mxu0 0.0
    %734 = vmatprep.subr.mxu0 0.0
    %735 = vmatpush1.msra.mxu0 0.0
    %736 = vmatprep.subr.mxu0 0.0
    %737 = vmatpush1.msra.mxu0 0.0
    %738 = vmatprep.subr.mxu0 0.0
    %739 = vmatpush1.msra.mxu0 0.0
    %740 = vmatprep.subr.mxu0 0.0
    %741 = vmatpush1.msra.mxu0 0.0
    %742 = vmatprep.subr.mxu0 0.0
    %743 = vmatpush1.msra.mxu0 0.0
    %744 = vmatprep.subr.mxu0 0.0
    %745 = vmatpush1.msra.mxu0 0.0
    %746 = vmatprep.subr.mxu0 0.0
    %747 = vmatpush1.msra.mxu0 0.0
    %748 = vmatprep.subr.mxu0 0.0
    %749 = vmatpush1.msra.mxu0 0.0
    %750 = vmatprep.subr.mxu0 0.0
    %751 = vmatpush1.msra.mxu0 0.0
    %752 = vmatprep.subr.mxu0 0.0
    %753 = vmatpush1.msra.mxu0 0.0
    %754 = vmatprep.subr.mxu0 0.0
    %755 = vmatpush1.msra.mxu0 0.0
    %756 = vmatprep.subr.mxu0 0.0
    %757 = vmatpush1.msra.mxu0 0.0
    %758 = vmatprep.subr.mxu0 0.0
    %759 = vmatpush1.msra.mxu0 0.0
    %760 = vmatprep.subr.mxu0 0.0
    %761 = vmatpush1.msra.mxu0 %v731
    %762 = vmatprep.subr.mxu0 0.0
    %763 = vmatpush1.msra.mxu0 %v730
    %764 = vmatprep.subr.mxu0 0.0
    %765 = vmatpush2.msra.mxu0 0.0
    %766 = vmatprep.subr.mxu0 0.0
    %767 = vmatpush2.msra.mxu0 0.0
    %768 = vmatprep.subr.mxu0 0.0
    %769 = vmatpush2.msra.mxu0 0.0
    %770 = vmatprep.subr.mxu0 0.0
    %771 = vmatpush2.msra.mxu0 0.0
    %772 = vmatprep.subr.mxu0 0.0
    %773 = vmatpush2.msra.mxu0 0.0
    %774 = vmatprep.subr.mxu0 0.0
    %775 = vmatpush2.msra.mxu0 0.0
    %776 = vmatprep.subr.mxu0 0.0
    %777 = vmatpush2.msra.mxu0 0.0
    %778 = vmatprep.subr.mxu0 0.0
    %779 = vmatpush2.msra.mxu0 0.0
    %780 = vmatprep.subr.mxu0 0.0
    %781 = vmatpush2.msra.mxu0 0.0
    %782 = vmatprep.subr.mxu0 0.0
    %783 = vmatpush2.msra.mxu0 0.0
    %784 = vmatprep.subr.mxu0 0.0
    %785 = vmatpush2.msra.mxu0 0.0
    %786 = vmatprep.subr.mxu0 0.0
    %787 = vmatpush2.msra.mxu0 0.0
    %788 = vmatprep.subr.mxu0 0.0
    %789 = vmatpush2.msra.mxu0 0.0
    %790 = vmatprep.subr.mxu0 0.0
    %791 = vmatpush2.msra.mxu0 0.0
    %792 = vmatprep.subr.mxu0 0.0
    %793 = vmatpush2.msra.mxu0 0.0
    %794 = vmatprep.subr.mxu0 0.0
    %795 = vmatpush2.msra.mxu0 0.0
    %796 = vmatprep.mubr.f32.mxu0 0.0
    %797 = vmatmul.mubr.f32.gmra.mxu0 %v295
    %v798 = vpop.f32.mrf.mxu0
    %v799 = vadd.f32 0.0, %v798
    %v800 = vpop.f32.mrf.mxu0
    %801 = vmatprep.mubr.f32.mxu0 0.0
    %802 = vmatmul.mubr.f32.gmra.mxu0 %v298
    %v803 = vpop.f32.mrf.mxu0
    %v804 = vadd.f32 0.0, %v803
    %v805 = vpop.f32.mrf.mxu0
    %806 = vmatprep.mubr.f32.mxu0 0.0
    %807 = vmatmul.mubr.f32.gmra.mxu0 %v301
    %v808 = vpop.f32.mrf.mxu0
    %v809 = vadd.f32 0.0, %v808
    %v810 = vpop.f32.mrf.mxu0
    %811 = vmatprep.mubr.f32.mxu0 0.0
    %812 = vmatmul.mubr.f32.gmra.mxu0 %v304
    %v813 = vpop.f32.mrf.mxu0
    %v814 = vadd.f32 0.0, %v813
    %v815 = vpop.f32.mrf.mxu0
    %816 = vmatprep.mubr.f32.mxu0 0.0
    %817 = vmatmul.mubr.f32.gmra.mxu0 %v307
    %v818 = vpop.f32.mrf.mxu0
    %v819 = vadd.f32 0.0, %v818
    %v820 = vpop.f32.mrf.mxu0
    %821 = vmatprep.mubr.f32.mxu0 0.0
    %822 = vmatmul.mubr.f32.gmra.mxu0 %v310
    %v823 = vpop.f32.mrf.mxu0
    %v824 = vadd.f32 0.0, %v823
    %v825 = vpop.f32.mrf.mxu0
    %826 = vmatprep.mubr.f32.mxu0 0.0
    %827 = vmatmul.mubr.f32.gmra.mxu0 %v313
    %v828 = vpop.f32.mrf.mxu0
    %v829 = vadd.f32 0.0, %v828
    %v830 = vpop.f32.mrf.mxu0
    %831 = vmatprep.mubr.f32.mxu0 0.0
    %832 = vmatmul.mubr.f32.gmra.mxu0 %v316
    %v833 = vpop.f32.mrf.mxu0
    %v834 = vadd.f32 0.0, %v833
    %v835 = vpop.f32.mrf.mxu0
    %836 = vmatprep.mubr.f32.mxu0 0.0
    %837 = vmatmul.mubr.f32.gmra.mxu0 %v319
    %v838 = vpop.f32.mrf.mxu0
    %v839 = vadd.f32 0.0, %v838
    %v840 = vpop.f32.mrf.mxu0
    %841 = vmatprep.mubr.f32.mxu0 0.0
    %842 = vmatmul.mubr.f32.gmra.mxu0 %v322
    %v843 = vpop.f32.mrf.mxu0
    %v844 = vadd.f32 0.0, %v843
    %v845 = vpop.f32.mrf.mxu0
    %846 = vmatprep.mubr.f32.mxu0 0.0
    %847 = vmatmul.mubr.f32.gmra.mxu0 %v325
    %v848 = vpop.f32.mrf.mxu0
    %v849 = vadd.f32 0.0, %v848
    %v850 = vpop.f32.mrf.mxu0
    %851 = vmatprep.mubr.f32.mxu0 0.0
    %852 = vmatmul.mubr.f32.gmra.mxu0 %v328
    %v853 = vpop.f32.mrf.mxu0
    %v854 = vadd.f32 0.0, %v853
    %v855 = vpop.f32.mrf.mxu0
    %856 = vmatprep.mubr.f32.mxu0 0.0
    %857 = vmatmul.mubr.f32.gmra.mxu0 %v331
    %v858 = vpop.f32.mrf.mxu0
    %v859 = vadd.f32 0.0, %v858
    %v860 = vpop.f32.mrf.mxu0
    %861 = vmatprep.mubr.f32.mxu0 0.0
    %862 = vmatmul.mubr.f32.gmra.mxu0 %v334
    %v863 = vpop.f32.mrf.mxu0
    %v864 = vadd.f32 0.0, %v863
    %v865 = vpop.f32.mrf.mxu0
    %866 = vmatprep.mubr.f32.mxu0 0.0
    %867 = vmatmul.mubr.f32.gmra.mxu0 %v337
    %v868 = vpop.f32.mrf.mxu0
    %v869 = vadd.f32 0.0, %v868
    %v870 = vpop.f32.mrf.mxu0
    %871 = vmatprep.mubr.f32.mxu0 0.0
    %872 = vmatmul.mubr.f32.gmra.mxu0 %v340
    %v873 = vpop.f32.mrf.mxu0
    %v874 = vadd.f32 0.0, %v873
    %v875 = vpop.f32.mrf.mxu0
    %876 = vdwg.mxu0
    %877 = vmatprep.subr.mxu0 0.0
    %878 = vmatpush1.msra.mxu0 %v727
    %879 = vmatprep.subr.mxu0 0.0
    %880 = vmatpush1.msra.mxu0 %v722
    %881 = vmatprep.subr.mxu0 0.0
    %882 = vmatpush1.msra.mxu0 %v717
    %883 = vmatprep.subr.mxu0 0.0
    %884 = vmatpush1.msra.mxu0 %v712
    %885 = vmatprep.subr.mxu0 0.0
    %886 = vmatpush1.msra.mxu0 %v707
    %887 = vmatprep.subr.mxu0 0.0
    %888 = vmatpush1.msra.mxu0 %v702
    %889 = vmatprep.subr.mxu0 0.0
    %890 = vmatpush1.msra.mxu0 %v697
    %891 = vmatprep.subr.mxu0 0.0
    %892 = vmatpush1.msra.mxu0 %v692
    %893 = vmatprep.subr.mxu0 0.0
    %894 = vmatpush1.msra.mxu0 %v687
    %895 = vmatprep.subr.mxu0 0.0
    %896 = vmatpush1.msra.mxu0 %v682
    %897 = vmatprep.subr.mxu0 0.0
    %898 = vmatpush1.msra.mxu0 %v677
    %899 = vmatprep.subr.mxu0 0.0
    %900 = vmatpush1.msra.mxu0 %v672
    %901 = vmatprep.subr.mxu0 0.0
    %902 = vmatpush1.msra.mxu0 %v667
    %903 = vmatprep.subr.mxu0 0.0
    %904 = vmatpush1.msra.mxu0 %v662
    %905 = vmatprep.subr.mxu0 0.0
    %906 = vmatpush1.msra.mxu0 %v657
    %907 = vmatprep.subr.mxu0 0.0
    %908 = vmatpush1.msra.mxu0 %v652
    %909 = vmatprep.subr.mxu0 0.0
    %910 = vmatpush2.msra.mxu0 %v874
    %911 = vmatprep.subr.mxu0 0.0
    %912 = vmatpush2.msra.mxu0 %v869
    %913 = vmatprep.subr.mxu0 0.0
    %914 = vmatpush2.msra.mxu0 %v864
    %915 = vmatprep.subr.mxu0 0.0
    %916 = vmatpush2.msra.mxu0 %v859
    %917 = vmatprep.subr.mxu0 0.0
    %918 = vmatpush2.msra.mxu0 %v854
    %919 = vmatprep.subr.mxu0 0.0
    %920 = vmatpush2.msra.mxu0 %v849
    %921 = vmatprep.subr.mxu0 0.0
    %922 = vmatpush2.msra.mxu0 %v844
    %923 = vmatprep.subr.mxu0 0.0
    %924 = vmatpush2.msra.mxu0 %v839
    %925 = vmatprep.subr.mxu0 0.0
    %926 = vmatpush2.msra.mxu0 %v834
    %927 = vmatprep.subr.mxu0 0.0
    %928 = vmatpush2.msra.mxu0 %v829
    %929 = vmatprep.subr.mxu0 0.0
    %930 = vmatpush2.msra.mxu0 %v824
    %931 = vmatprep.subr.mxu0 0.0
    %932 = vmatpush2.msra.mxu0 %v819
    %933 = vmatprep.subr.mxu0 0.0
    %934 = vmatpush2.msra.mxu0 %v814
    %935 = vmatprep.subr.mxu0 0.0
    %936 = vmatpush2.msra.mxu0 %v809
    %937 = vmatprep.subr.mxu0 0.0
    %938 = vmatpush2.msra.mxu0 %v804
    %939 = vmatprep.subr.mxu0 0.0
    %940 = vmatpush2.msra.mxu0 %v799
    %941 = vmatprep.mubr.f32.mxu0 %v552
    %942 = vmatmul.mubr.f32.gmra.mxu0 %v262
    %v943 = vpop.f32.mrf.mxu0
    %v944 = vadd.f32 0.0, %v943
    %v945 = vpop.f32.mrf.mxu0
    %946 = vmatprep.mubr.f32.mxu0 %v554
    %947 = vmatmul.mubr.f32.gmra.mxu0 %v264
    %v948 = vpop.f32.mrf.mxu0
    %v949 = vadd.f32 0.0, %v948
    %v950 = vpop.f32.mrf.mxu0
    %951 = vmatprep.mubr.f32.mxu0 %v556
    %952 = vmatmul.mubr.f32.gmra.mxu0 %v266
    %v953 = vpop.f32.mrf.mxu0
    %v954 = vadd.f32 0.0, %v953
    %v955 = vpop.f32.mrf.mxu0
    %956 = vmatprep.mubr.f32.mxu0 %v558
    %957 = vmatmul.mubr.f32.gmra.mxu0 %v268
    %v958 = vpop.f32.mrf.mxu0
    %v959 = vadd.f32 0.0, %v958
    %v960 = vpop.f32.mrf.mxu0
    %961 = vmatprep.mubr.f32.mxu0 %v560
    %962 = vmatmul.mubr.f32.gmra.mxu0 %v270
    %v963 = vpop.f32.mrf.mxu0
    %v964 = vadd.f32 0.0, %v963
    %v965 = vpop.f32.mrf.mxu0
    %966 = vmatprep.mubr.f32.mxu0 %v562
    %967 = vmatmul.mubr.f32.gmra.mxu0 %v272
    %v968 = vpop.f32.mrf.mxu0
    %v969 = vadd.f32 0.0, %v968
    %v970 = vpop.f32.mrf.mxu0
    %971 = vmatprep.mubr.f32.mxu0 %v564
    %972 = vmatmul.mubr.f32.gmra.mxu0 %v274
    %v973 = vpop.f32.mrf.mxu0
    %v974 = vadd.f32 0.0, %v973
    %v975 = vpop.f32.mrf.mxu0
    %976 = vmatprep.mubr.f32.mxu0 %v566
    %977 = vmatmul.mubr.f32.gmra.mxu0 %v276
    %v978 = vpop.f32.mrf.mxu0
    %v979 = vadd.f32 0.0, %v978
    %v980 = vpop.f32.mrf.mxu0
    %981 = vmatprep.mubr.f32.mxu0 %v568
    %982 = vmatmul.mubr.f32.gmra.mxu0 %v278
    %v983 = vpop.f32.mrf.mxu0
    %v984 = vadd.f32 0.0, %v983
    %v985 = vpop.f32.mrf.mxu0
    %986 = vmatprep.mubr.f32.mxu0 %v570
    %987 = vmatmul.mubr.f32.gmra.mxu0 %v280
    %v988 = vpop.f32.mrf.mxu0
    %v989 = vadd.f32 0.0, %v988
    %v990 = vpop.f32.mrf.mxu0
    %991 = vmatprep.mubr.f32.mxu0 %v572
    %992 = vmatmul.mubr.f32.gmra.mxu0 %v282
    %v993 = vpop.f32.mrf.mxu0
    %v994 = vadd.f32 0.0, %v993
    %v995 = vpop.f32.mrf.mxu0
    %996 = vmatprep.mubr.f32.mxu0 %v574
    %997 = vmatmul.mubr.f32.gmra.mxu0 %v284
    %v998 = vpop.f32.mrf.mxu0
    %v999 = vadd.f32 0.0, %v998
    %v1000 = vpop.f32.mrf.mxu0
    %1001 = vmatprep.mubr.f32.mxu0 %v576
    %1002 = vmatmul.mubr.f32.gmra.mxu0 %v286
    %v1003 = vpop.f32.mrf.mxu0
    %v1004 = vadd.f32 0.0, %v1003
    %v1005 = vpop.f32.mrf.mxu0
    %1006 = vmatprep.mubr.f32.mxu0 %v578
    %1007 = vmatmul.mubr.f32.gmra.mxu0 %v288
    %v1008 = vpop.f32.mrf.mxu0
    %v1009 = vadd.f32 0.0, %v1008
    %v1010 = vpop.f32.mrf.mxu0
    %1011 = vmatprep.mubr.f32.mxu0 %v580
    %1012 = vmatmul.mubr.f32.gmra.mxu0 %v290
    %v1013 = vpop.f32.mrf.mxu0
    %v1014 = vadd.f32 0.0, %v1013
    %v1015 = vpop.f32.mrf.mxu0
    %1016 = vmatprep.mubr.f32.mxu0 %v582
    %1017 = vmatmul.mubr.f32.gmra.mxu0 %v292
    %v1018 = vpop.f32.mrf.mxu0
    %v1019 = vadd.f32 0.0, %v1018
    %v1020 = vpop.f32.mrf.mxu0
    %1021 = vdwg.mxu0
    %v1022 = vmax.f32 %v944, 0.0
    %v1023 = vmax.f32 %v949, 0.0
    %v1024 = vmax.f32 %v954, 0.0
    %v1025 = vmax.f32 %v959, 0.0
    %v1026 = vmax.f32 %v964, 0.0
    %v1027 = vmax.f32 %v969, 0.0
    %v1028 = vmax.f32 %v974, 0.0
    %v1029 = vmax.f32 %v979, 0.0
    %v1030 = vmax.f32 %v984, 0.0
    %v1031 = vmax.f32 %v989, 0.0
    %v1032 = vmax.f32 %v994, 0.0
    %v1033 = vmax.f32 %v999, 0.0
    %v1034 = vmax.f32 %v1004, 0.0
    %v1035 = vmax.f32 %v1009, 0.0
    %v1036 = vmax.f32 %v1014, 0.0
    %v1037 = vmax.f32 %v1019, 0.0
    %v1038 = vld [vmem:[#allocation5] sm:$0xff]
    %v1039 = vld [vmem:[#allocation5 + $0x8] sm:$0xff]
    %v1040 = vld [vmem:[#allocation5 + $0x10] sm:$0xff]
    %v1041 = vld [vmem:[#allocation5 + $0x18] sm:$0xff]
    %v1042 = vld [vmem:[#allocation5 + $0x20] sm:$0xff]
    %v1043 = vld [vmem:[#allocation5 + $0x28] sm:$0xff]
    %v1044 = vld [vmem:[#allocation5 + $0x30] sm:$0xff]
    %v1045 = vld [vmem:[#allocation5 + $0x38] sm:$0xff]
    %v1046 = vld [vmem:[#allocation5 + $0x40] sm:$0xff]
    %v1047 = vld [vmem:[#allocation5 + $0x48] sm:$0xff]
    %v1048 = vld [vmem:[#allocation5 + $0x50] sm:$0xff]
    %v1049 = vld [vmem:[#allocation5 + $0x58] sm:$0xff]
    %v1050 = vld [vmem:[#allocation5 + $0x60] sm:$0xff]
    %v1051 = vld [vmem:[#allocation5 + $0x68] sm:$0xff]
    %v1052 = vld [vmem:[#allocation5 + $0x70] sm:$0xff]
    %v1053 = vld [vmem:[#allocation5 + $0x78] sm:$0xff]
    %1054 = vmatprep.subr.mxu0 0.0
    %1055 = vmatpush1.msra.mxu0 %v1037
    %1056 = vmatprep.subr.mxu0 0.0
    %1057 = vmatpush1.msra.mxu0 %v1036
    %1058 = vmatprep.subr.mxu0 0.0
    %1059 = vmatpush1.msra.mxu0 %v1035
    %1060 = vmatprep.subr.mxu0 0.0
    %1061 = vmatpush1.msra.mxu0 %v1034
    %1062 = vmatprep.subr.mxu0 0.0
    %1063 = vmatpush1.msra.mxu0 %v1033
    %1064 = vmatprep.subr.mxu0 0.0
    %1065 = vmatpush1.msra.mxu0 %v1032
    %1066 = vmatprep.subr.mxu0 0.0
    %1067 = vmatpush1.msra.mxu0 %v1031
    %1068 = vmatprep.subr.mxu0 0.0
    %1069 = vmatpush1.msra.mxu0 %v1030
    %1070 = vmatprep.subr.mxu0 0.0
    %1071 = vmatpush1.msra.mxu0 %v1029
    %1072 = vmatprep.subr.mxu0 0.0
    %1073 = vmatpush1.msra.mxu0 %v1028
    %1074 = vmatprep.subr.mxu0 0.0
    %1075 = vmatpush1.msra.mxu0 %v1027
    %1076 = vmatprep.subr.mxu0 0.0
    %1077 = vmatpush1.msra.mxu0 %v1026
    %1078 = vmatprep.subr.mxu0 0.0
    %1079 = vmatpush1.msra.mxu0 %v1025
    %1080 = vmatprep.subr.mxu0 0.0
    %1081 = vmatpush1.msra.mxu0 %v1024
    %1082 = vmatprep.subr.mxu0 0.0
    %1083 = vmatpush1.msra.mxu0 %v1023
    %1084 = vmatprep.subr.mxu0 0.0
    %1085 = vmatpush1.msra.mxu0 %v1022
    %1086 = vmatprep.subr.mxu0 0.0
    %1087 = vmatpush2.msra.mxu0 0.0
    %1088 = vmatprep.subr.mxu0 0.0
    %1089 = vmatpush2.msra.mxu0 0.0
    %1090 = vmatprep.subr.mxu0 0.0
    %1091 = vmatpush2.msra.mxu0 0.0
    %1092 = vmatprep.subr.mxu0 0.0
    %1093 = vmatpush2.msra.mxu0 0.0
    %1094 = vmatprep.subr.mxu0 0.0
    %1095 = vmatpush2.msra.mxu0 0.0
    %1096 = vmatprep.subr.mxu0 0.0
    %1097 = vmatpush2.msra.mxu0 0.0
    %1098 = vmatprep.subr.mxu0 0.0
    %1099 = vmatpush2.msra.mxu0 0.0
    %1100 = vmatprep.subr.mxu0 0.0
    %1101 = vmatpush2.msra.mxu0 0.0
    %1102 = vmatprep.subr.mxu0 0.0
    %1103 = vmatpush2.msra.mxu0 0.0
    %1104 = vmatprep.subr.mxu0 0.0
    %1105 = vmatpush2.msra.mxu0 0.0
    %1106 = vmatprep.subr.mxu0 0.0
    %1107 = vmatpush2.msra.mxu0 0.0
    %1108 = vmatprep.subr.mxu0 0.0
    %1109 = vmatpush2.msra.mxu0 0.0
    %1110 = vmatprep.subr.mxu0 0.0
    %1111 = vmatpush2.msra.mxu0 0.0
    %1112 = vmatprep.subr.mxu0 0.0
    %1113 = vmatpush2.msra.mxu0 0.0
    %1114 = vmatprep.subr.mxu0 0.0
    %1115 = vmatpush2.msra.mxu0 0.0
    %1116 = vmatprep.subr.mxu0 0.0
    %1117 = vmatpush2.msra.mxu0 0.0
    %1118 = vmatprep.mubr.f32.mxu0 0.0
    %1119 = vmatmul.mubr.f32.gmra.mxu0 %v1038
    %v1120 = vpop.f32.mrf.mxu0
    %v1121 = vadd.f32 0.0, %v1120
    %v1122 = vpop.f32.mrf.mxu0
    %1123 = vmatprep.mubr.f32.mxu0 0.0
    %1124 = vmatmul.mubr.f32.gmra.mxu0 %v1039
    %v1125 = vpop.f32.mrf.mxu0
    %v1126 = vadd.f32 0.0, %v1125
    %v1127 = vpop.f32.mrf.mxu0
    %1128 = vmatprep.mubr.f32.mxu0 0.0
    %1129 = vmatmul.mubr.f32.gmra.mxu0 %v1040
    %v1130 = vpop.f32.mrf.mxu0
    %v1131 = vadd.f32 0.0, %v1130
    %v1132 = vpop.f32.mrf.mxu0
    %1133 = vmatprep.mubr.f32.mxu0 0.0
    %1134 = vmatmul.mubr.f32.gmra.mxu0 %v1041
    %v1135 = vpop.f32.mrf.mxu0
    %v1136 = vadd.f32 0.0, %v1135
    %v1137 = vpop.f32.mrf.mxu0
    %1138 = vmatprep.mubr.f32.mxu0 0.0
    %1139 = vmatmul.mubr.f32.gmra.mxu0 %v1042
    %v1140 = vpop.f32.mrf.mxu0
    %v1141 = vadd.f32 0.0, %v1140
    %v1142 = vpop.f32.mrf.mxu0
    %1143 = vmatprep.mubr.f32.mxu0 0.0
    %1144 = vmatmul.mubr.f32.gmra.mxu0 %v1043
    %v1145 = vpop.f32.mrf.mxu0
    %v1146 = vadd.f32 0.0, %v1145
    %v1147 = vpop.f32.mrf.mxu0
    %1148 = vmatprep.mubr.f32.mxu0 0.0
    %1149 = vmatmul.mubr.f32.gmra.mxu0 %v1044
    %v1150 = vpop.f32.mrf.mxu0
    %v1151 = vadd.f32 0.0, %v1150
    %v1152 = vpop.f32.mrf.mxu0
    %1153 = vmatprep.mubr.f32.mxu0 0.0
    %1154 = vmatmul.mubr.f32.gmra.mxu0 %v1045
    %v1155 = vpop.f32.mrf.mxu0
    %v1156 = vadd.f32 0.0, %v1155
    %v1157 = vpop.f32.mrf.mxu0
    %1158 = vmatprep.mubr.f32.mxu0 0.0
    %1159 = vmatmul.mubr.f32.gmra.mxu0 %v1046
    %v1160 = vpop.f32.mrf.mxu0
    %v1161 = vadd.f32 0.0, %v1160
    %v1162 = vpop.f32.mrf.mxu0
    %1163 = vmatprep.mubr.f32.mxu0 0.0
    %1164 = vmatmul.mubr.f32.gmra.mxu0 %v1047
    %v1165 = vpop.f32.mrf.mxu0
    %v1166 = vadd.f32 0.0, %v1165
    %v1167 = vpop.f32.mrf.mxu0
    %1168 = vmatprep.mubr.f32.mxu0 0.0
    %1169 = vmatmul.mubr.f32.gmra.mxu0 %v1048
    %v1170 = vpop.f32.mrf.mxu0
    %v1171 = vadd.f32 0.0, %v1170
    %v1172 = vpop.f32.mrf.mxu0
    %1173 = vmatprep.mubr.f32.mxu0 0.0
    %1174 = vmatmul.mubr.f32.gmra.mxu0 %v1049
    %v1175 = vpop.f32.mrf.mxu0
    %v1176 = vadd.f32 0.0, %v1175
    %v1177 = vpop.f32.mrf.mxu0
    %1178 = vmatprep.mubr.f32.mxu0 0.0
    %1179 = vmatmul.mubr.f32.gmra.mxu0 %v1050
    %v1180 = vpop.f32.mrf.mxu0
    %v1181 = vadd.f32 0.0, %v1180
    %v1182 = vpop.f32.mrf.mxu0
    %1183 = vmatprep.mubr.f32.mxu0 0.0
    %1184 = vmatmul.mubr.f32.gmra.mxu0 %v1051
    %v1185 = vpop.f32.mrf.mxu0
    %v1186 = vadd.f32 0.0, %v1185
    %v1187 = vpop.f32.mrf.mxu0
    %1188 = vmatprep.mubr.f32.mxu0 0.0
    %1189 = vmatmul.mubr.f32.gmra.mxu0 %v1052
    %v1190 = vpop.f32.mrf.mxu0
    %v1191 = vadd.f32 0.0, %v1190
    %v1192 = vpop.f32.mrf.mxu0
    %1193 = vmatprep.mubr.f32.mxu0 0.0
    %1194 = vmatmul.mubr.f32.gmra.mxu0 %v1053
    %v1195 = vpop.f32.mrf.mxu0
    %v1196 = vadd.f32 0.0, %v1195
    %v1197 = vpop.f32.mrf.mxu0
    %1198 = vdwg.mxu0
    %v1199 = vld [vmem:[#allocation11] sm:$0xff]
    %v1200 = vld [vmem:[#allocation11 + $0x8] sm:$0xff]
    %v1201 = vld [vmem:[#allocation13] sm:$0x1]
    %v1203 = vlaneseq
    %v1204 = vshrl.u32 %v1203, 7
    %v1205 = vsub.s32 0, %v1204
    %v1206 = vrot.slane %v1201, %v1205
    %v1209 = vsel %vm293, %v1121, 0
    %v1212 = vsel %vm293, %v1126, 0
    %v1215 = vsel %vm293, %v1131, 0
    %v1218 = vsel %vm293, %v1136, 0
    %v1221 = vsel %vm293, %v1141, 0
    %v1224 = vsel %vm293, %v1146, 0
    %v1227 = vsel %vm293, %v1151, 0
    %v1230 = vsel %vm293, %v1156, 0
    %v1233 = vsel %vm293, %v1161, 0
    %v1236 = vsel %vm293, %v1166, 0
    %v1239 = vsel %vm293, %v1171, 0
    %v1242 = vsel %vm293, %v1176, 0
    %v1245 = vsel %vm293, %v1181, 0
    %v1248 = vsel %vm293, %v1186, 0
    %v1251 = vsel %vm293, %v1191, 0
    %v1254 = vsel %vm293, %v1196, 0
    %1256 = vmatprep.subr.mxu0 0.0
    %1257 = vmatpush1.msra.mxu0 0.0
    %1258 = vmatprep.subr.mxu0 0.0
    %1259 = vmatpush1.msra.mxu0 0.0
    %1260 = vmatprep.subr.mxu0 0.0
    %1261 = vmatpush1.msra.mxu0 0.0
    %1262 = vmatprep.subr.mxu0 0.0
    %1263 = vmatpush1.msra.mxu0 0.0
    %1264 = vmatprep.subr.mxu0 0.0
    %1265 = vmatpush1.msra.mxu0 0.0
    %1266 = vmatprep.subr.mxu0 0.0
    %1267 = vmatpush1.msra.mxu0 0.0
    %1268 = vmatprep.subr.mxu0 0.0
    %1269 = vmatpush1.msra.mxu0 0.0
    %1270 = vmatprep.subr.mxu0 0.0
    %1271 = vmatpush1.msra.mxu0 0.0
    %1272 = vmatprep.subr.mxu0 0.0
    %1273 = vmatpush1.msra.mxu0 0.0
    %1274 = vmatprep.subr.mxu0 0.0
    %1275 = vmatpush1.msra.mxu0 0.0
    %1276 = vmatprep.subr.mxu0 0.0
    %1277 = vmatpush1.msra.mxu0 0.0
    %1278 = vmatprep.subr.mxu0 0.0
    %1279 = vmatpush1.msra.mxu0 0.0
    %1280 = vmatprep.subr.mxu0 0.0
    %1281 = vmatpush1.msra.mxu0 0.0
    %1282 = vmatprep.subr.mxu0 0.0
    %1283 = vmatpush1.msra.mxu0 0.0
    %1284 = vmatprep.subr.mxu0 0.0
    %1285 = vmatpush1.msra.mxu0 %v1200
    %1286 = vmatprep.subr.mxu0 0.0
    %1287 = vmatpush1.msra.mxu0 %v1199
    %1288 = vmatprep.subr.mxu0 0.0
    %1289 = vmatpush2.msra.mxu0 0.0
    %1290 = vmatprep.subr.mxu0 0.0
    %1291 = vmatpush2.msra.mxu0 0.0
    %1292 = vmatprep.subr.mxu0 0.0
    %1293 = vmatpush2.msra.mxu0 0.0
    %1294 = vmatprep.subr.mxu0 0.0
    %1295 = vmatpush2.msra.mxu0 0.0
    %1296 = vmatprep.subr.mxu0 0.0
    %1297 = vmatpush2.msra.mxu0 0.0
    %1298 = vmatprep.subr.mxu0 0.0
    %1299 = vmatpush2.msra.mxu0 0.0
    %1300 = vmatprep.subr.mxu0 0.0
    %1301 = vmatpush2.msra.mxu0 0.0
    %1302 = vmatprep.subr.mxu0 0.0
    %1303 = vmatpush2.msra.mxu0 0.0
    %1304 = vmatprep.subr.mxu0 0.0
    %1305 = vmatpush2.msra.mxu0 0.0
    %1306 = vmatprep.subr.mxu0 0.0
    %1307 = vmatpush2.msra.mxu0 0.0
    %1308 = vmatprep.subr.mxu0 0.0
    %1309 = vmatpush2.msra.mxu0 0.0
    %1310 = vmatprep.subr.mxu0 0.0
    %1311 = vmatpush2.msra.mxu0 0.0
    %1312 = vmatprep.subr.mxu0 0.0
    %1313 = vmatpush2.msra.mxu0 0.0
    %1314 = vmatprep.subr.mxu0 0.0
    %1315 = vmatpush2.msra.mxu0 0.0
    %1316 = vmatprep.subr.mxu0 0.0
    %1317 = vmatpush2.msra.mxu0 0.0
    %1318 = vmatprep.subr.mxu0 0.0
    %1319 = vmatpush2.msra.mxu0 0.0
    %1320 = vmatprep.mubr.f32.mxu0 0.0
    %1321 = vmatmul.mubr.f32.gmra.mxu0 %v1209
    %v1322 = vpop.f32.mrf.mxu0
    %v1323 = vadd.f32 %v1206, %v1322
    %v1324 = vpop.f32.mrf.mxu0
    %1325 = vmatprep.mubr.f32.mxu0 0.0
    %1326 = vmatmul.mubr.f32.gmra.mxu0 %v1212
    %v1327 = vpop.f32.mrf.mxu0
    %v1328 = vadd.f32 %v1206, %v1327
    %v1329 = vpop.f32.mrf.mxu0
    %1330 = vmatprep.mubr.f32.mxu0 0.0
    %1331 = vmatmul.mubr.f32.gmra.mxu0 %v1215
    %v1332 = vpop.f32.mrf.mxu0
    %v1333 = vadd.f32 %v1206, %v1332
    %v1334 = vpop.f32.mrf.mxu0
    %1335 = vmatprep.mubr.f32.mxu0 0.0
    %1336 = vmatmul.mubr.f32.gmra.mxu0 %v1218
    %v1337 = vpop.f32.mrf.mxu0
    %v1338 = vadd.f32 %v1206, %v1337
    %v1339 = vpop.f32.mrf.mxu0
    %1340 = vmatprep.mubr.f32.mxu0 0.0
    %1341 = vmatmul.mubr.f32.gmra.mxu0 %v1221
    %v1342 = vpop.f32.mrf.mxu0
    %v1343 = vadd.f32 %v1206, %v1342
    %v1344 = vpop.f32.mrf.mxu0
    %1345 = vmatprep.mubr.f32.mxu0 0.0
    %1346 = vmatmul.mubr.f32.gmra.mxu0 %v1224
    %v1347 = vpop.f32.mrf.mxu0
    %v1348 = vadd.f32 %v1206, %v1347
    %v1349 = vpop.f32.mrf.mxu0
    %1350 = vmatprep.mubr.f32.mxu0 0.0
    %1351 = vmatmul.mubr.f32.gmra.mxu0 %v1227
    %v1352 = vpop.f32.mrf.mxu0
    %v1353 = vadd.f32 %v1206, %v1352
    %v1354 = vpop.f32.mrf.mxu0
    %1355 = vmatprep.mubr.f32.mxu0 0.0
    %1356 = vmatmul.mubr.f32.gmra.mxu0 %v1230
    %v1357 = vpop.f32.mrf.mxu0
    %v1358 = vadd.f32 %v1206, %v1357
    %v1359 = vpop.f32.mrf.mxu0
    %1360 = vmatprep.mubr.f32.mxu0 0.0
    %1361 = vmatmul.mubr.f32.gmra.mxu0 %v1233
    %v1362 = vpop.f32.mrf.mxu0
    %v1363 = vadd.f32 %v1206, %v1362
    %v1364 = vpop.f32.mrf.mxu0
    %1365 = vmatprep.mubr.f32.mxu0 0.0
    %1366 = vmatmul.mubr.f32.gmra.mxu0 %v1236
    %v1367 = vpop.f32.mrf.mxu0
    %v1368 = vadd.f32 %v1206, %v1367
    %v1369 = vpop.f32.mrf.mxu0
    %1370 = vmatprep.mubr.f32.mxu0 0.0
    %1371 = vmatmul.mubr.f32.gmra.mxu0 %v1239
    %v1372 = vpop.f32.mrf.mxu0
    %v1373 = vadd.f32 %v1206, %v1372
    %v1374 = vpop.f32.mrf.mxu0
    %1375 = vmatprep.mubr.f32.mxu0 0.0
    %1376 = vmatmul.mubr.f32.gmra.mxu0 %v1242
    %v1377 = vpop.f32.mrf.mxu0
    %v1378 = vadd.f32 %v1206, %v1377
    %v1379 = vpop.f32.mrf.mxu0
    %1380 = vmatprep.mubr.f32.mxu0 0.0
    %1381 = vmatmul.mubr.f32.gmra.mxu0 %v1245
    %v1382 = vpop.f32.mrf.mxu0
    %v1383 = vadd.f32 %v1206, %v1382
    %v1384 = vpop.f32.mrf.mxu0
    %1385 = vmatprep.mubr.f32.mxu0 0.0
    %1386 = vmatmul.mubr.f32.gmra.mxu0 %v1248
    %v1387 = vpop.f32.mrf.mxu0
    %v1388 = vadd.f32 %v1206, %v1387
    %v1389 = vpop.f32.mrf.mxu0
    %1390 = vmatprep.mubr.f32.mxu0 0.0
    %1391 = vmatmul.mubr.f32.gmra.mxu0 %v1251
    %v1392 = vpop.f32.mrf.mxu0
    %v1393 = vadd.f32 %v1206, %v1392
    %v1394 = vpop.f32.mrf.mxu0
    %1395 = vmatprep.mubr.f32.mxu0 0.0
    %1396 = vmatmul.mubr.f32.gmra.mxu0 %v1254
    %v1397 = vpop.f32.mrf.mxu0
    %v1398 = vadd.f32 %v1206, %v1397
    %v1399 = vpop.f32.mrf.mxu0
    %1400 = vdwg.mxu0
    %v1401 = vld [vmem:[%s9] sm:$0xff]
    %v1402 = vld [vmem:[%s9 + $0x8] sm:$0xff]
    %v1403 = vld [vmem:[%s9 + $0x10] sm:$0xff]
    %v1404 = vld [vmem:[%s9 + $0x18] sm:$0xff]
    %v1405 = vxor.u32 %v1323, 2147483648
    %v1406 = vxor.u32 %v1328, 2147483648
    %v1407 = vxor.u32 %v1333, 2147483648
    %v1408 = vxor.u32 %v1338, 2147483648
    %v1409 = vmul.f32 %v1405, 1.442695
    %v1410 = vpow.pop %v1409
    %v1411 = vmul.f32 %v1406, 1.442695
    %v1412 = vpow.pop %v1411
    %v1413 = vmul.f32 %v1407, 1.442695
    %v1414 = vpow.pop %v1413
    %v1415 = vmul.f32 %v1408, 1.442695
    %v1416 = vpow.pop %v1415
    %v1417 = vadd.f32 %v1410, 1.0
    %v1418 = vadd.f32 %v1412, 1.0
    %v1419 = vadd.f32 %v1414, 1.0
    %v1420 = vadd.f32 %v1416, 1.0
    %v1421 = vrcp.pop %v1417
    %v1422 = vmul.f32 1.0, %v1421
    %v1423 = vrcp.pop %v1418
    %v1424 = vmul.f32 1.0, %v1423
    %v1425 = vrcp.pop %v1419
    %v1426 = vmul.f32 1.0, %v1425
    %v1427 = vrcp.pop %v1420
    %v1428 = vmul.f32 1.0, %v1427
    %v1429 = vtanh.pop %v1323
    %v1430 = vtanh.pop %v1328
    %v1431 = vtanh.pop %v1333
    %v1432 = vtanh.pop %v1338
    %v1433 = vmul.f32 %v1422, 0.0
    %v1434 = vmul.f32 %v1424, 0.0
    %v1435 = vmul.f32 %v1426, 0.0
    %v1436 = vmul.f32 %v1428, 0.0
    %1441 = vrot.lane.b32.xlu0 %v1429, 64
    %v1442 = vpop.permute.xlu0 %1441
    %1443 = vrot.lane.b32.xlu0 %v1430, 64
    %v1444 = vpop.permute.xlu0 %1443
    %1445 = vrot.lane.b32.xlu0 %v1431, 64
    %v1446 = vpop.permute.xlu0 %1445
    %1447 = vrot.lane.b32.xlu0 %v1432, 64
    %v1448 = vpop.permute.xlu0 %1447
    %v1453 = vmul.f32 %v1422, %v1442
    %v1454 = vmul.f32 %v1424, %v1444
    %v1455 = vmul.f32 %v1426, %v1446
    %v1456 = vmul.f32 %v1428, %v1448
    %1461 = vrot.lane.b32.xlu0 %v1453, 32
    %v1462 = vpop.permute.xlu0 %1461
    %1463 = vrot.lane.b32.xlu0 %v1454, 32
    %v1464 = vpop.permute.xlu0 %1463
    %1465 = vrot.lane.b32.xlu0 %v1455, 32
    %v1466 = vpop.permute.xlu0 %1465
    %1467 = vrot.lane.b32.xlu0 %v1456, 32
    %v1468 = vpop.permute.xlu0 %1467
    %v1473 = vadd.f32 %v1433, %v1462
    %v1474 = vadd.f32 %v1434, %v1464
    %v1475 = vadd.f32 %v1435, %v1466
    %v1476 = vadd.f32 %v1436, %v1468
    %v1477 = vtanh.pop %v1473
    %v1478 = vtanh.pop %v1474
    %v1479 = vtanh.pop %v1475
    %v1480 = vtanh.pop %v1476
    %1485 = vrot.lane.b32.xlu0 %v1477, 64
    %v1486 = vpop.permute.xlu0 %1485
    %1487 = vrot.lane.b32.xlu0 %v1478, 64
    %v1488 = vpop.permute.xlu0 %1487
    %1489 = vrot.lane.b32.xlu0 %v1479, 64
    %v1490 = vpop.permute.xlu0 %1489
    %1491 = vrot.lane.b32.xlu0 %v1480, 64
    %v1492 = vpop.permute.xlu0 %1491
    %v1497 = vmul.f32 %v1422, %v1486
    %v1498 = vmul.f32 %v1424, %v1488
    %v1499 = vmul.f32 %v1426, %v1490
    %v1500 = vmul.f32 %v1428, %v1492
    %1505 = vrot.lane.b32.xlu0 %v1497, 32
    %v1506 = vpop.permute.xlu0 %1505
    %1507 = vrot.lane.b32.xlu0 %v1498, 32
    %v1508 = vpop.permute.xlu0 %1507
    %1509 = vrot.lane.b32.xlu0 %v1499, 32
    %v1510 = vpop.permute.xlu0 %1509
    %1511 = vrot.lane.b32.xlu0 %v1500, 32
    %v1512 = vpop.permute.xlu0 %1511
    %vm1513 = vcmask 261120
    %v1514 = vsel %vm1513, %v1506, 0
    %v1516 = vsel %vm1513, %v1508, 0
    %v1518 = vsel %vm1513, %v1510, 0
    %v1520 = vsel %vm1513, %v1512, 0
    %1522 = vmatprep.subr.mxu0 0.0
    %1523 = vmatpush1.msra.mxu0 0.0
    %1524 = vmatprep.subr.mxu0 0.0
    %1525 = vmatpush1.msra.mxu0 0.0
    %1526 = vmatprep.subr.mxu0 0.0
    %1527 = vmatpush1.msra.mxu0 0.0
    %1528 = vmatprep.subr.mxu0 0.0
    %1529 = vmatpush1.msra.mxu0 0.0
    %1530 = vmatprep.subr.mxu0 0.0
    %1531 = vmatpush1.msra.mxu0 0.0
    %1532 = vmatprep.subr.mxu0 0.0
    %1533 = vmatpush1.msra.mxu0 0.0
    %1534 = vmatprep.subr.mxu0 0.0
    %1535 = vmatpush1.msra.mxu0 0.0
    %1536 = vmatprep.subr.mxu0 0.0
    %1537 = vmatpush1.msra.mxu0 0.0
    %1538 = vmatprep.subr.mxu0 0.0
    %1539 = vmatpush1.msra.mxu0 0.0
    %1540 = vmatprep.subr.mxu0 0.0
    %1541 = vmatpush1.msra.mxu0 0.0
    %1542 = vmatprep.subr.mxu0 0.0
    %1543 = vmatpush1.msra.mxu0 0.0
    %1544 = vmatprep.subr.mxu0 0.0
    %1545 = vmatpush1.msra.mxu0 0.0
    %1546 = vmatprep.subr.mxu0 0.0
    %1547 = vmatpush1.msra.mxu0 %v1404
    %1548 = vmatprep.subr.mxu0 0.0
    %1549 = vmatpush1.msra.mxu0 %v1403
    %1550 = vmatprep.subr.mxu0 0.0
    %1551 = vmatpush1.msra.mxu0 %v1402
    %1552 = vmatprep.subr.mxu0 0.0
    %1553 = vmatpush1.msra.mxu0 %v1401
    %1554 = vmatprep.subr.mxu0 0.0
    %1555 = vmatpush2.msra.mxu0 0.0
    %1556 = vmatprep.subr.mxu0 0.0
    %1557 = vmatpush2.msra.mxu0 0.0
    %1558 = vmatprep.subr.mxu0 0.0
    %1559 = vmatpush2.msra.mxu0 0.0
    %1560 = vmatprep.subr.mxu0 0.0
    %1561 = vmatpush2.msra.mxu0 0.0
    %1562 = vmatprep.subr.mxu0 0.0
    %1563 = vmatpush2.msra.mxu0 0.0
    %1564 = vmatprep.subr.mxu0 0.0
    %1565 = vmatpush2.msra.mxu0 0.0
    %1566 = vmatprep.subr.mxu0 0.0
    %1567 = vmatpush2.msra.mxu0 0.0
    %1568 = vmatprep.subr.mxu0 0.0
    %1569 = vmatpush2.msra.mxu0 0.0
    %1570 = vmatprep.subr.mxu0 0.0
    %1571 = vmatpush2.msra.mxu0 0.0
    %1572 = vmatprep.subr.mxu0 0.0
    %1573 = vmatpush2.msra.mxu0 0.0
    %1574 = vmatprep.subr.mxu0 0.0
    %1575 = vmatpush2.msra.mxu0 0.0
    %1576 = vmatprep.subr.mxu0 0.0
    %1577 = vmatpush2.msra.mxu0 0.0
    %1578 = vmatprep.subr.mxu0 0.0
    %1579 = vmatpush2.msra.mxu0 0.0
    %1580 = vmatprep.subr.mxu0 0.0
    %1581 = vmatpush2.msra.mxu0 0.0
    %1582 = vmatprep.subr.mxu0 0.0
    %1583 = vmatpush2.msra.mxu0 0.0
    %1584 = vmatprep.subr.mxu0 0.0
    %1585 = vmatpush2.msra.mxu0 0.0
    %1586 = vmatprep.mubr.f32.mxu0 0.0
    %1587 = vmatmul.mubr.f32.gmra.mxu0 %v1514
    %v1588 = vpop.f32.mrf.mxu0
    %v1589 = vadd.f32 0.0, %v1588
    %v1590 = vpop.f32.mrf.mxu0
    %1591 = vmatprep.mubr.f32.mxu0 0.0
    %1592 = vmatmul.mubr.f32.gmra.mxu0 %v1516
    %v1593 = vpop.f32.mrf.mxu0
    %v1594 = vadd.f32 0.0, %v1593
    %v1595 = vpop.f32.mrf.mxu0
    %1596 = vmatprep.mubr.f32.mxu0 0.0
    %1597 = vmatmul.mubr.f32.gmra.mxu0 %v1518
    %v1598 = vpop.f32.mrf.mxu0
    %v1599 = vadd.f32 0.0, %v1598
    %v1600 = vpop.f32.mrf.mxu0
    %1601 = vmatprep.mubr.f32.mxu0 0.0
    %1602 = vmatmul.mubr.f32.gmra.mxu0 %v1520
    %v1603 = vpop.f32.mrf.mxu0
    %v1604 = vadd.f32 0.0, %v1603
    %v1605 = vpop.f32.mrf.mxu0
    %1606 = vdwg.mxu0
    %v1607 = vadd.f32 %v1343, %v1589
    %v1608 = vadd.f32 %v1348, %v1594
    %v1609 = vadd.f32 %v1353, %v1599
    %v1610 = vadd.f32 %v1358, %v1604
    %v1611 = vxor.u32 %v1607, 2147483648
    %v1612 = vxor.u32 %v1608, 2147483648
    %v1613 = vxor.u32 %v1609, 2147483648
    %v1614 = vxor.u32 %v1610, 2147483648
    %v1615 = vmul.f32 %v1611, 1.442695
    %v1616 = vpow.pop %v1615
    %v1617 = vmul.f32 %v1612, 1.442695
    %v1618 = vpow.pop %v1617
    %v1619 = vmul.f32 %v1613, 1.442695
    %v1620 = vpow.pop %v1619
    %v1621 = vmul.f32 %v1614, 1.442695
    %v1622 = vpow.pop %v1621
    %v1623 = vadd.f32 %v1616, 1.0
    %v1624 = vadd.f32 %v1618, 1.0
    %v1625 = vadd.f32 %v1620, 1.0
    %v1626 = vadd.f32 %v1622, 1.0
    %v1627 = vrcp.pop %v1623
    %v1628 = vmul.f32 1.0, %v1627
    %v1629 = vrcp.pop %v1624
    %v1630 = vmul.f32 1.0, %v1629
    %v1631 = vrcp.pop %v1625
    %v1632 = vmul.f32 1.0, %v1631
    %v1633 = vrcp.pop %v1626
    %v1634 = vmul.f32 1.0, %v1633
    %v1635 = vtanh.pop %v1607
    %v1636 = vtanh.pop %v1608
    %v1637 = vtanh.pop %v1609
    %v1638 = vtanh.pop %v1610
    %v1639 = vmul.f32 %v1628, %v1473
    %v1640 = vmul.f32 %v1630, %v1474
    %v1641 = vmul.f32 %v1632, %v1475
    %v1642 = vmul.f32 %v1634, %v1476
    %1647 = vrot.lane.b32.xlu0 %v1635, 64
    %v1648 = vpop.permute.xlu0 %1647
    %1649 = vrot.lane.b32.xlu0 %v1636, 64
    %v1650 = vpop.permute.xlu0 %1649
    %1651 = vrot.lane.b32.xlu0 %v1637, 64
    %v1652 = vpop.permute.xlu0 %1651
    %1653 = vrot.lane.b32.xlu0 %v1638, 64
    %v1654 = vpop.permute.xlu0 %1653
    %v1659 = vmul.f32 %v1628, %v1648
    %v1660 = vmul.f32 %v1630, %v1650
    %v1661 = vmul.f32 %v1632, %v1652
    %v1662 = vmul.f32 %v1634, %v1654
    %1667 = vrot.lane.b32.xlu0 %v1659, 32
    %v1668 = vpop.permute.xlu0 %1667
    %1669 = vrot.lane.b32.xlu0 %v1660, 32
    %v1670 = vpop.permute.xlu0 %1669
    %1671 = vrot.lane.b32.xlu0 %v1661, 32
    %v1672 = vpop.permute.xlu0 %1671
    %1673 = vrot.lane.b32.xlu0 %v1662, 32
    %v1674 = vpop.permute.xlu0 %1673
    %v1679 = vadd.f32 %v1639, %v1668
    %v1680 = vadd.f32 %v1640, %v1670
    %v1681 = vadd.f32 %v1641, %v1672
    %v1682 = vadd.f32 %v1642, %v1674
    %v1683 = vtanh.pop %v1679
    %v1684 = vtanh.pop %v1680
    %v1685 = vtanh.pop %v1681
    %v1686 = vtanh.pop %v1682
    %1691 = vrot.lane.b32.xlu0 %v1683, 64
    %v1692 = vpop.permute.xlu0 %1691
    %1693 = vrot.lane.b32.xlu0 %v1684, 64
    %v1694 = vpop.permute.xlu0 %1693
    %1695 = vrot.lane.b32.xlu0 %v1685, 64
    %v1696 = vpop.permute.xlu0 %1695
    %1697 = vrot.lane.b32.xlu0 %v1686, 64
    %v1698 = vpop.permute.xlu0 %1697
    %v1703 = vmul.f32 %v1628, %v1692
    %v1704 = vmul.f32 %v1630, %v1694
    %v1705 = vmul.f32 %v1632, %v1696
    %v1706 = vmul.f32 %v1634, %v1698
    %1711 = vrot.lane.b32.xlu0 %v1703, 32
    %v1712 = vpop.permute.xlu0 %1711
    %1713 = vrot.lane.b32.xlu0 %v1704, 32
    %v1714 = vpop.permute.xlu0 %1713
    %1715 = vrot.lane.b32.xlu0 %v1705, 32
    %v1716 = vpop.permute.xlu0 %1715
    %1717 = vrot.lane.b32.xlu0 %v1706, 32
    %v1718 = vpop.permute.xlu0 %1717
    %v1719 = vsel %vm1513, %v1712, 0
    %v1721 = vsel %vm1513, %v1714, 0
    %v1723 = vsel %vm1513, %v1716, 0
    %v1725 = vsel %vm1513, %v1718, 0
    %1727 = vmatprep.subr.mxu0 0.0
    %1728 = vmatpush1.msra.mxu0 0.0
    %1729 = vmatprep.subr.mxu0 0.0
    %1730 = vmatpush1.msra.mxu0 0.0
    %1731 = vmatprep.subr.mxu0 0.0
    %1732 = vmatpush1.msra.mxu0 0.0
    %1733 = vmatprep.subr.mxu0 0.0
    %1734 = vmatpush1.msra.mxu0 0.0
    %1735 = vmatprep.subr.mxu0 0.0
    %1736 = vmatpush1.msra.mxu0 0.0
    %1737 = vmatprep.subr.mxu0 0.0
    %1738 = vmatpush1.msra.mxu0 0.0
    %1739 = vmatprep.subr.mxu0 0.0
    %1740 = vmatpush1.msra.mxu0 0.0
    %1741 = vmatprep.subr.mxu0 0.0
    %1742 = vmatpush1.msra.mxu0 0.0
    %1743 = vmatprep.subr.mxu0 0.0
    %1744 = vmatpush1.msra.mxu0 0.0
    %1745 = vmatprep.subr.mxu0 0.0
    %1746 = vmatpush1.msra.mxu0 0.0
    %1747 = vmatprep.subr.mxu0 0.0
    %1748 = vmatpush1.msra.mxu0 0.0
    %1749 = vmatprep.subr.mxu0 0.0
    %1750 = vmatpush1.msra.mxu0 0.0
    %1751 = vmatprep.subr.mxu0 0.0
    %1752 = vmatpush1.msra.mxu0 %v1404
    %1753 = vmatprep.subr.mxu0 0.0
    %1754 = vmatpush1.msra.mxu0 %v1403
    %1755 = vmatprep.subr.mxu0 0.0
    %1756 = vmatpush1.msra.mxu0 %v1402
    %1757 = vmatprep.subr.mxu0 0.0
    %1758 = vmatpush1.msra.mxu0 %v1401
    %1759 = vmatprep.subr.mxu0 0.0
    %1760 = vmatpush2.msra.mxu0 0.0
    %1761 = vmatprep.subr.mxu0 0.0
    %1762 = vmatpush2.msra.mxu0 0.0
    %1763 = vmatprep.subr.mxu0 0.0
    %1764 = vmatpush2.msra.mxu0 0.0
    %1765 = vmatprep.subr.mxu0 0.0
    %1766 = vmatpush2.msra.mxu0 0.0
    %1767 = vmatprep.subr.mxu0 0.0
    %1768 = vmatpush2.msra.mxu0 0.0
    %1769 = vmatprep.subr.mxu0 0.0
    %1770 = vmatpush2.msra.mxu0 0.0
    %1771 = vmatprep.subr.mxu0 0.0
    %1772 = vmatpush2.msra.mxu0 0.0
    %1773 = vmatprep.subr.mxu0 0.0
    %1774 = vmatpush2.msra.mxu0 0.0
    %1775 = vmatprep.subr.mxu0 0.0
    %1776 = vmatpush2.msra.mxu0 0.0
    %1777 = vmatprep.subr.mxu0 0.0
    %1778 = vmatpush2.msra.mxu0 0.0
    %1779 = vmatprep.subr.mxu0 0.0
    %1780 = vmatpush2.msra.mxu0 0.0
    %1781 = vmatprep.subr.mxu0 0.0
    %1782 = vmatpush2.msra.mxu0 0.0
    %1783 = vmatprep.subr.mxu0 0.0
    %1784 = vmatpush2.msra.mxu0 0.0
    %1785 = vmatprep.subr.mxu0 0.0
    %1786 = vmatpush2.msra.mxu0 0.0
    %1787 = vmatprep.subr.mxu0 0.0
    %1788 = vmatpush2.msra.mxu0 0.0
    %1789 = vmatprep.subr.mxu0 0.0
    %1790 = vmatpush2.msra.mxu0 0.0
    %1791 = vmatprep.mubr.f32.mxu0 0.0
    %1792 = vmatmul.mubr.f32.gmra.mxu0 %v1719
    %v1793 = vpop.f32.mrf.mxu0
    %v1794 = vadd.f32 0.0, %v1793
    %v1795 = vpop.f32.mrf.mxu0
    %1796 = vmatprep.mubr.f32.mxu0 0.0
    %1797 = vmatmul.mubr.f32.gmra.mxu0 %v1721
    %v1798 = vpop.f32.mrf.mxu0
    %v1799 = vadd.f32 0.0, %v1798
    %v1800 = vpop.f32.mrf.mxu0
    %1801 = vmatprep.mubr.f32.mxu0 0.0
    %1802 = vmatmul.mubr.f32.gmra.mxu0 %v1723
    %v1803 = vpop.f32.mrf.mxu0
    %v1804 = vadd.f32 0.0, %v1803
    %v1805 = vpop.f32.mrf.mxu0
    %1806 = vmatprep.mubr.f32.mxu0 0.0
    %1807 = vmatmul.mubr.f32.gmra.mxu0 %v1725
    %v1808 = vpop.f32.mrf.mxu0
    %v1809 = vadd.f32 0.0, %v1808
    %v1810 = vpop.f32.mrf.mxu0
    %1811 = vdwg.mxu0
    %v1812 = vadd.f32 %v1363, %v1794
    %v1813 = vadd.f32 %v1368, %v1799
    %v1814 = vadd.f32 %v1373, %v1804
    %v1815 = vadd.f32 %v1378, %v1809
    %v1816 = vxor.u32 %v1812, 2147483648
    %v1817 = vxor.u32 %v1813, 2147483648
    %v1818 = vxor.u32 %v1814, 2147483648
    %v1819 = vxor.u32 %v1815, 2147483648
    %v1820 = vmul.f32 %v1816, 1.442695
    %v1821 = vpow.pop %v1820
    %v1822 = vmul.f32 %v1817, 1.442695
    %v1823 = vpow.pop %v1822
    %v1824 = vmul.f32 %v1818, 1.442695
    %v1825 = vpow.pop %v1824
    %v1826 = vmul.f32 %v1819, 1.442695
    %v1827 = vpow.pop %v1826
    %v1828 = vadd.f32 %v1821, 1.0
    %v1829 = vadd.f32 %v1823, 1.0
    %v1830 = vadd.f32 %v1825, 1.0
    %v1831 = vadd.f32 %v1827, 1.0
    %v1832 = vrcp.pop %v1828
    %v1833 = vmul.f32 1.0, %v1832
    %v1834 = vrcp.pop %v1829
    %v1835 = vmul.f32 1.0, %v1834
    %v1836 = vrcp.pop %v1830
    %v1837 = vmul.f32 1.0, %v1836
    %v1838 = vrcp.pop %v1831
    %v1839 = vmul.f32 1.0, %v1838
    %v1840 = vtanh.pop %v1812
    %v1841 = vtanh.pop %v1813
    %v1842 = vtanh.pop %v1814
    %v1843 = vtanh.pop %v1815
    %v1844 = vmul.f32 %v1833, %v1679
    %v1845 = vmul.f32 %v1835, %v1680
    %v1846 = vmul.f32 %v1837, %v1681
    %v1847 = vmul.f32 %v1839, %v1682
    %1852 = vrot.lane.b32.xlu0 %v1840, 64
    %v1853 = vpop.permute.xlu0 %1852
    %1854 = vrot.lane.b32.xlu0 %v1841, 64
    %v1855 = vpop.permute.xlu0 %1854
    %1856 = vrot.lane.b32.xlu0 %v1842, 64
    %v1857 = vpop.permute.xlu0 %1856
    %1858 = vrot.lane.b32.xlu0 %v1843, 64
    %v1859 = vpop.permute.xlu0 %1858
    %v1864 = vmul.f32 %v1833, %v1853
    %v1865 = vmul.f32 %v1835, %v1855
    %v1866 = vmul.f32 %v1837, %v1857
    %v1867 = vmul.f32 %v1839, %v1859
    %1872 = vrot.lane.b32.xlu0 %v1864, 32
    %v1873 = vpop.permute.xlu0 %1872
    %1874 = vrot.lane.b32.xlu0 %v1865, 32
    %v1875 = vpop.permute.xlu0 %1874
    %1876 = vrot.lane.b32.xlu0 %v1866, 32
    %v1877 = vpop.permute.xlu0 %1876
    %1878 = vrot.lane.b32.xlu0 %v1867, 32
    %v1879 = vpop.permute.xlu0 %1878
    %v1884 = vadd.f32 %v1844, %v1873
    %v1885 = vadd.f32 %v1845, %v1875
    %v1886 = vadd.f32 %v1846, %v1877
    %v1887 = vadd.f32 %v1847, %v1879
    %v1888 = vtanh.pop %v1884
    %v1889 = vtanh.pop %v1885
    %v1890 = vtanh.pop %v1886
    %v1891 = vtanh.pop %v1887
    %1896 = vrot.lane.b32.xlu0 %v1888, 64
    %v1897 = vpop.permute.xlu0 %1896
    %1898 = vrot.lane.b32.xlu0 %v1889, 64
    %v1899 = vpop.permute.xlu0 %1898
    %1900 = vrot.lane.b32.xlu0 %v1890, 64
    %v1901 = vpop.permute.xlu0 %1900
    %1902 = vrot.lane.b32.xlu0 %v1891, 64
    %v1903 = vpop.permute.xlu0 %1902
    %v1908 = vmul.f32 %v1833, %v1897
    %v1909 = vmul.f32 %v1835, %v1899
    %v1910 = vmul.f32 %v1837, %v1901
    %v1911 = vmul.f32 %v1839, %v1903
    %1916 = vrot.lane.b32.xlu0 %v1908, 32
    %v1917 = vpop.permute.xlu0 %1916
    %1918 = vrot.lane.b32.xlu0 %v1909, 32
    %v1919 = vpop.permute.xlu0 %1918
    %1920 = vrot.lane.b32.xlu0 %v1910, 32
    %v1921 = vpop.permute.xlu0 %1920
    %1922 = vrot.lane.b32.xlu0 %v1911, 32
    %v1923 = vpop.permute.xlu0 %1922
    %v1924 = vsel %vm1513, %v1917, 0
    %v1926 = vsel %vm1513, %v1919, 0
    %v1928 = vsel %vm1513, %v1921, 0
    %v1930 = vsel %vm1513, %v1923, 0
    %1932 = vmatprep.subr.mxu0 0.0
    %1933 = vmatpush1.msra.mxu0 0.0
    %1934 = vmatprep.subr.mxu0 0.0
    %1935 = vmatpush1.msra.mxu0 0.0
    %1936 = vmatprep.subr.mxu0 0.0
    %1937 = vmatpush1.msra.mxu0 0.0
    %1938 = vmatprep.subr.mxu0 0.0
    %1939 = vmatpush1.msra.mxu0 0.0
    %1940 = vmatprep.subr.mxu0 0.0
    %1941 = vmatpush1.msra.mxu0 0.0
    %1942 = vmatprep.subr.mxu0 0.0
    %1943 = vmatpush1.msra.mxu0 0.0
    %1944 = vmatprep.subr.mxu0 0.0
    %1945 = vmatpush1.msra.mxu0 0.0
    %1946 = vmatprep.subr.mxu0 0.0
    %1947 = vmatpush1.msra.mxu0 0.0
    %1948 = vmatprep.subr.mxu0 0.0
    %1949 = vmatpush1.msra.mxu0 0.0
    %1950 = vmatprep.subr.mxu0 0.0
    %1951 = vmatpush1.msra.mxu0 0.0
    %1952 = vmatprep.subr.mxu0 0.0
    %1953 = vmatpush1.msra.mxu0 0.0
    %1954 = vmatprep.subr.mxu0 0.0
    %1955 = vmatpush1.msra.mxu0 0.0
    %1956 = vmatprep.subr.mxu0 0.0
    %1957 = vmatpush1.msra.mxu0 %v1404
    %1958 = vmatprep.subr.mxu0 0.0
    %1959 = vmatpush1.msra.mxu0 %v1403
    %1960 = vmatprep.subr.mxu0 0.0
    %1961 = vmatpush1.msra.mxu0 %v1402
    %1962 = vmatprep.subr.mxu0 0.0
    %1963 = vmatpush1.msra.mxu0 %v1401
    %1964 = vmatprep.subr.mxu0 0.0
    %1965 = vmatpush2.msra.mxu0 0.0
    %1966 = vmatprep.subr.mxu0 0.0
    %1967 = vmatpush2.msra.mxu0 0.0
    %1968 = vmatprep.subr.mxu0 0.0
    %1969 = vmatpush2.msra.mxu0 0.0
    %1970 = vmatprep.subr.mxu0 0.0
    %1971 = vmatpush2.msra.mxu0 0.0
    %1972 = vmatprep.subr.mxu0 0.0
    %1973 = vmatpush2.msra.mxu0 0.0
    %1974 = vmatprep.subr.mxu0 0.0
    %1975 = vmatpush2.msra.mxu0 0.0
    %1976 = vmatprep.subr.mxu0 0.0
    %1977 = vmatpush2.msra.mxu0 0.0
    %1978 = vmatprep.subr.mxu0 0.0
    %1979 = vmatpush2.msra.mxu0 0.0
    %1980 = vmatprep.subr.mxu0 0.0
    %1981 = vmatpush2.msra.mxu0 0.0
    %1982 = vmatprep.subr.mxu0 0.0
    %1983 = vmatpush2.msra.mxu0 0.0
    %1984 = vmatprep.subr.mxu0 0.0
    %1985 = vmatpush2.msra.mxu0 0.0
    %1986 = vmatprep.subr.mxu0 0.0
    %1987 = vmatpush2.msra.mxu0 0.0
    %1988 = vmatprep.subr.mxu0 0.0
    %1989 = vmatpush2.msra.mxu0 0.0
    %1990 = vmatprep.subr.mxu0 0.0
    %1991 = vmatpush2.msra.mxu0 0.0
    %1992 = vmatprep.subr.mxu0 0.0
    %1993 = vmatpush2.msra.mxu0 0.0
    %1994 = vmatprep.subr.mxu0 0.0
    %1995 = vmatpush2.msra.mxu0 0.0
    %1996 = vmatprep.mubr.f32.mxu0 0.0
    %1997 = vmatmul.mubr.f32.gmra.mxu0 %v1924
    %v1998 = vpop.f32.mrf.mxu0
    %v1999 = vadd.f32 0.0, %v1998
    %v2000 = vpop.f32.mrf.mxu0
    %2001 = vmatprep.mubr.f32.mxu0 0.0
    %2002 = vmatmul.mubr.f32.gmra.mxu0 %v1926
    %v2003 = vpop.f32.mrf.mxu0
    %v2004 = vadd.f32 0.0, %v2003
    %v2005 = vpop.f32.mrf.mxu0
    %2006 = vmatprep.mubr.f32.mxu0 0.0
    %2007 = vmatmul.mubr.f32.gmra.mxu0 %v1928
    %v2008 = vpop.f32.mrf.mxu0
    %v2009 = vadd.f32 0.0, %v2008
    %v2010 = vpop.f32.mrf.mxu0
    %2011 = vmatprep.mubr.f32.mxu0 0.0
    %2012 = vmatmul.mubr.f32.gmra.mxu0 %v1930
    %v2013 = vpop.f32.mrf.mxu0
    %v2014 = vadd.f32 0.0, %v2013
    %v2015 = vpop.f32.mrf.mxu0
    %2016 = vdwg.mxu0
    %v2017 = vadd.f32 %v1383, %v1999
    %v2018 = vadd.f32 %v1388, %v2004
    %v2019 = vadd.f32 %v1393, %v2009
    %v2020 = vadd.f32 %v1398, %v2014
    %v2021 = vxor.u32 %v2017, 2147483648
    %v2022 = vxor.u32 %v2018, 2147483648
    %v2023 = vxor.u32 %v2019, 2147483648
    %v2024 = vxor.u32 %v2020, 2147483648
    %v2025 = vmul.f32 %v2021, 1.442695
    %v2026 = vpow.pop %v2025
    %v2027 = vmul.f32 %v2022, 1.442695
    %v2028 = vpow.pop %v2027
    %v2029 = vmul.f32 %v2023, 1.442695
    %v2030 = vpow.pop %v2029
    %v2031 = vmul.f32 %v2024, 1.442695
    %v2032 = vpow.pop %v2031
    %v2033 = vadd.f32 %v2026, 1.0
    %v2034 = vadd.f32 %v2028, 1.0
    %v2035 = vadd.f32 %v2030, 1.0
    %v2036 = vadd.f32 %v2032, 1.0
    %v2037 = vrcp.pop %v2033
    %v2038 = vmul.f32 1.0, %v2037
    %v2039 = vrcp.pop %v2034
    %v2040 = vmul.f32 1.0, %v2039
    %v2041 = vrcp.pop %v2035
    %v2042 = vmul.f32 1.0, %v2041
    %v2043 = vrcp.pop %v2036
    %v2044 = vmul.f32 1.0, %v2043
    %v2045 = vtanh.pop %v2017
    %v2046 = vtanh.pop %v2018
    %v2047 = vtanh.pop %v2019
    %v2048 = vtanh.pop %v2020
    %v2049 = vmul.f32 %v2038, %v1884
    %v2050 = vmul.f32 %v2040, %v1885
    %v2051 = vmul.f32 %v2042, %v1886
    %v2052 = vmul.f32 %v2044, %v1887
    %2057 = vrot.lane.b32.xlu0 %v2045, 64
    %v2058 = vpop.permute.xlu0 %2057
    %2059 = vrot.lane.b32.xlu0 %v2046, 64
    %v2060 = vpop.permute.xlu0 %2059
    %2061 = vrot.lane.b32.xlu0 %v2047, 64
    %v2062 = vpop.permute.xlu0 %2061
    %2063 = vrot.lane.b32.xlu0 %v2048, 64
    %v2064 = vpop.permute.xlu0 %2063
    %v2069 = vmul.f32 %v2038, %v2058
    %v2070 = vmul.f32 %v2040, %v2060
    %v2071 = vmul.f32 %v2042, %v2062
    %v2072 = vmul.f32 %v2044, %v2064
    %2077 = vrot.lane.b32.xlu0 %v2069, 32
    %v2078 = vpop.permute.xlu0 %2077
    %2079 = vrot.lane.b32.xlu0 %v2070, 32
    %v2080 = vpop.permute.xlu0 %2079
    %2081 = vrot.lane.b32.xlu0 %v2071, 32
    %v2082 = vpop.permute.xlu0 %2081
    %2083 = vrot.lane.b32.xlu0 %v2072, 32
    %v2084 = vpop.permute.xlu0 %2083
    %v2089 = vadd.f32 %v2049, %v2078
    %v2090 = vadd.f32 %v2050, %v2080
    %v2091 = vadd.f32 %v2051, %v2082
    %v2092 = vadd.f32 %v2052, %v2084
    %v2093 = vtanh.pop %v2089
    %v2094 = vtanh.pop %v2090
    %v2095 = vtanh.pop %v2091
    %v2096 = vtanh.pop %v2092
    %2101 = vrot.lane.b32.xlu0 %v2093, 64
    %v2102 = vpop.permute.xlu0 %2101
    %2103 = vrot.lane.b32.xlu0 %v2094, 64
    %v2104 = vpop.permute.xlu0 %2103
    %2105 = vrot.lane.b32.xlu0 %v2095, 64
    %v2106 = vpop.permute.xlu0 %2105
    %2107 = vrot.lane.b32.xlu0 %v2096, 64
    %v2108 = vpop.permute.xlu0 %2107
    %v2113 = vmul.f32 %v2038, %v2102
    %v2114 = vmul.f32 %v2040, %v2104
    %v2115 = vmul.f32 %v2042, %v2106
    %v2116 = vmul.f32 %v2044, %v2108
    %v2117 = vld [vmem:[#allocation7] sm:$0xff]
    %v2118 = vld [vmem:[#allocation7 + $0x8] sm:$0xff]
    %v2119 = vld [vmem:[#allocation7 + $0x10] sm:$0xff]
    %v2120 = vld [vmem:[#allocation7 + $0x18] sm:$0xff]
    %2125 = vrot.lane.b32.xlu0 %v2113, 32
    %v2126 = vpop.permute.xlu0 %2125
    %2127 = vrot.lane.b32.xlu0 %v2114, 32
    %v2128 = vpop.permute.xlu0 %2127
    %2129 = vrot.lane.b32.xlu0 %v2115, 32
    %v2130 = vpop.permute.xlu0 %2129
    %2131 = vrot.lane.b32.xlu0 %v2116, 32
    %v2132 = vpop.permute.xlu0 %2131
    %2149 = vmatprep.subr.mxu0 0.0
    %2150 = vmatpush1.msra.mxu0 %v2132
    %2151 = vmatprep.subr.mxu0 0.0
    %2152 = vmatpush1.msra.mxu0 %v2130
    %2153 = vmatprep.subr.mxu0 0.0
    %2154 = vmatpush1.msra.mxu0 %v2128
    %2155 = vmatprep.subr.mxu0 0.0
    %2156 = vmatpush1.msra.mxu0 %v2126
    %2157 = vmatprep.subr.mxu0 0.0
    %2158 = vmatpush1.msra.mxu0 %v1923
    %2159 = vmatprep.subr.mxu0 0.0
    %2160 = vmatpush1.msra.mxu0 %v1921
    %2161 = vmatprep.subr.mxu0 0.0
    %2162 = vmatpush1.msra.mxu0 %v1919
    %2163 = vmatprep.subr.mxu0 0.0
    %2164 = vmatpush1.msra.mxu0 %v1917
    %2165 = vmatprep.subr.mxu0 0.0
    %2166 = vmatpush1.msra.mxu0 %v1718
    %2167 = vmatprep.subr.mxu0 0.0
    %2168 = vmatpush1.msra.mxu0 %v1716
    %2169 = vmatprep.subr.mxu0 0.0
    %2170 = vmatpush1.msra.mxu0 %v1714
    %2171 = vmatprep.subr.mxu0 0.0
    %2172 = vmatpush1.msra.mxu0 %v1712
    %2173 = vmatprep.subr.mxu0 0.0
    %2174 = vmatpush1.msra.mxu0 %v1512
    %2175 = vmatprep.subr.mxu0 0.0
    %2176 = vmatpush1.msra.mxu0 %v1510
    %2177 = vmatprep.subr.mxu0 0.0
    %2178 = vmatpush1.msra.mxu0 %v1508
    %2179 = vmatprep.subr.mxu0 0.0
    %2180 = vmatpush1.msra.mxu0 %v1506
    %2181 = vmatprep.subr.mxu0 0.0
    %2182 = vmatpush2.msra.mxu0 0.0
    %2183 = vmatprep.subr.mxu0 0.0
    %2184 = vmatpush2.msra.mxu0 0.0
    %2185 = vmatprep.subr.mxu0 0.0
    %2186 = vmatpush2.msra.mxu0 0.0
    %2187 = vmatprep.subr.mxu0 0.0
    %2188 = vmatpush2.msra.mxu0 0.0
    %2189 = vmatprep.subr.mxu0 0.0
    %2190 = vmatpush2.msra.mxu0 0.0
    %2191 = vmatprep.subr.mxu0 0.0
    %2192 = vmatpush2.msra.mxu0 0.0
    %2193 = vmatprep.subr.mxu0 0.0
    %2194 = vmatpush2.msra.mxu0 0.0
    %2195 = vmatprep.subr.mxu0 0.0
    %2196 = vmatpush2.msra.mxu0 0.0
    %2197 = vmatprep.subr.mxu0 0.0
    %2198 = vmatpush2.msra.mxu0 0.0
    %2199 = vmatprep.subr.mxu0 0.0
    %2200 = vmatpush2.msra.mxu0 0.0
    %2201 = vmatprep.subr.mxu0 0.0
    %2202 = vmatpush2.msra.mxu0 0.0
    %2203 = vmatprep.subr.mxu0 0.0
    %2204 = vmatpush2.msra.mxu0 0.0
    %2205 = vmatprep.subr.mxu0 0.0
    %2206 = vmatpush2.msra.mxu0 0.0
    %2207 = vmatprep.subr.mxu0 0.0
    %2208 = vmatpush2.msra.mxu0 0.0
    %2209 = vmatprep.subr.mxu0 0.0
    %2210 = vmatpush2.msra.mxu0 0.0
    %2211 = vmatprep.subr.mxu0 0.0
    %2212 = vmatpush2.msra.mxu0 0.0
    %2213 = vmatprep.mubr.f32.mxu0 0.0
    %2214 = vmatmul.mubr.f32.gmra.mxu0 %v2117
    %v2215 = vpop.f32.mrf.mxu0
    %v2216 = vadd.f32 0.0, %v2215
    %v2217 = vpop.f32.mrf.mxu0
    %2218 = vmatprep.mubr.f32.mxu0 0.0
    %2219 = vmatmul.mubr.f32.gmra.mxu0 %v2118
    %v2220 = vpop.f32.mrf.mxu0
    %v2221 = vadd.f32 0.0, %v2220
    %v2222 = vpop.f32.mrf.mxu0
    %2223 = vmatprep.mubr.f32.mxu0 0.0
    %2224 = vmatmul.mubr.f32.gmra.mxu0 %v2119
    %v2225 = vpop.f32.mrf.mxu0
    %v2226 = vadd.f32 0.0, %v2225
    %v2227 = vpop.f32.mrf.mxu0
    %2228 = vmatprep.mubr.f32.mxu0 0.0
    %2229 = vmatmul.mubr.f32.gmra.mxu0 %v2120
    %v2230 = vpop.f32.mrf.mxu0
    %v2231 = vadd.f32 0.0, %v2230
    %v2232 = vpop.f32.mrf.mxu0
    %2233 = vdwg.mxu0
    %v2234 = vld [vmem:[#allocation14] sm:$0xff]
    %v2235 = vld [vmem:[#allocation14 + $0x8] sm:$0xff]
    %v2236 = vld [vmem:[#allocation14 + $0x10] sm:$0xff]
    %v2237 = vld [vmem:[#allocation14 + $0x18] sm:$0xff]
    %v2238 = vld [vmem:[%s11] sm:$0x1]
    %v2240 = vlaneseq
    %v2241 = vshrl.u32 %v2240, 7
    %v2242 = vsub.s32 0, %v2241
    %v2243 = vrot.slane %v2238, %v2242
    %v2246 = vsel %vm1513, %v2216, 0
    %v2249 = vsel %vm1513, %v2221, 0
    %v2252 = vsel %vm1513, %v2226, 0
    %v2255 = vsel %vm1513, %v2231, 0
    %2257 = vmatprep.subr.mxu0 0.0
    %2258 = vmatpush1.msra.mxu0 0.0
    %2259 = vmatprep.subr.mxu0 0.0
    %2260 = vmatpush1.msra.mxu0 0.0
    %2261 = vmatprep.subr.mxu0 0.0
    %2262 = vmatpush1.msra.mxu0 0.0
    %2263 = vmatprep.subr.mxu0 0.0
    %2264 = vmatpush1.msra.mxu0 0.0
    %2265 = vmatprep.subr.mxu0 0.0
    %2266 = vmatpush1.msra.mxu0 0.0
    %2267 = vmatprep.subr.mxu0 0.0
    %2268 = vmatpush1.msra.mxu0 0.0
    %2269 = vmatprep.subr.mxu0 0.0
    %2270 = vmatpush1.msra.mxu0 0.0
    %2271 = vmatprep.subr.mxu0 0.0
    %2272 = vmatpush1.msra.mxu0 0.0
    %2273 = vmatprep.subr.mxu0 0.0
    %2274 = vmatpush1.msra.mxu0 0.0
    %2275 = vmatprep.subr.mxu0 0.0
    %2276 = vmatpush1.msra.mxu0 0.0
    %2277 = vmatprep.subr.mxu0 0.0
    %2278 = vmatpush1.msra.mxu0 0.0
    %2279 = vmatprep.subr.mxu0 0.0
    %2280 = vmatpush1.msra.mxu0 0.0
    %2281 = vmatprep.subr.mxu0 0.0
    %2282 = vmatpush1.msra.mxu0 %v2237
    %2283 = vmatprep.subr.mxu0 0.0
    %2284 = vmatpush1.msra.mxu0 %v2236
    %2285 = vmatprep.subr.mxu0 0.0
    %2286 = vmatpush1.msra.mxu0 %v2235
    %2287 = vmatprep.subr.mxu0 0.0
    %2288 = vmatpush1.msra.mxu0 %v2234
    %2289 = vmatprep.subr.mxu0 0.0
    %2290 = vmatpush2.msra.mxu0 0.0
    %2291 = vmatprep.subr.mxu0 0.0
    %2292 = vmatpush2.msra.mxu0 0.0
    %2293 = vmatprep.subr.mxu0 0.0
    %2294 = vmatpush2.msra.mxu0 0.0
    %2295 = vmatprep.subr.mxu0 0.0
    %2296 = vmatpush2.msra.mxu0 0.0
    %2297 = vmatprep.subr.mxu0 0.0
    %2298 = vmatpush2.msra.mxu0 0.0
    %2299 = vmatprep.subr.mxu0 0.0
    %2300 = vmatpush2.msra.mxu0 0.0
    %2301 = vmatprep.subr.mxu0 0.0
    %2302 = vmatpush2.msra.mxu0 0.0
    %2303 = vmatprep.subr.mxu0 0.0
    %2304 = vmatpush2.msra.mxu0 0.0
    %2305 = vmatprep.subr.mxu0 0.0
    %2306 = vmatpush2.msra.mxu0 0.0
    %2307 = vmatprep.subr.mxu0 0.0
    %2308 = vmatpush2.msra.mxu0 0.0
    %2309 = vmatprep.subr.mxu0 0.0
    %2310 = vmatpush2.msra.mxu0 0.0
    %2311 = vmatprep.subr.mxu0 0.0
    %2312 = vmatpush2.msra.mxu0 0.0
    %2313 = vmatprep.subr.mxu0 0.0
    %2314 = vmatpush2.msra.mxu0 0.0
    %2315 = vmatprep.subr.mxu0 0.0
    %2316 = vmatpush2.msra.mxu0 0.0
    %2317 = vmatprep.subr.mxu0 0.0
    %2318 = vmatpush2.msra.mxu0 0.0
    %2319 = vmatprep.subr.mxu0 0.0
    %2320 = vmatpush2.msra.mxu0 0.0
    %2321 = vmatprep.mubr.f32.mxu0 0.0
    %2322 = vmatmul.mubr.f32.gmra.mxu0 %v2246
    %v2323 = vpop.f32.mrf.mxu0
    %v2324 = vadd.f32 %v2243, %v2323
    %v2325 = vpop.f32.mrf.mxu0
    %2326 = vmatprep.mubr.f32.mxu0 0.0
    %2327 = vmatmul.mubr.f32.gmra.mxu0 %v2249
    %v2328 = vpop.f32.mrf.mxu0
    %v2329 = vadd.f32 %v2243, %v2328
    %v2330 = vpop.f32.mrf.mxu0
    %2331 = vmatprep.mubr.f32.mxu0 0.0
    %2332 = vmatmul.mubr.f32.gmra.mxu0 %v2252
    %v2333 = vpop.f32.mrf.mxu0
    %v2334 = vadd.f32 %v2243, %v2333
    %v2335 = vpop.f32.mrf.mxu0
    %2336 = vmatprep.mubr.f32.mxu0 0.0
    %2337 = vmatmul.mubr.f32.gmra.mxu0 %v2255
    %v2338 = vpop.f32.mrf.mxu0
    %v2339 = vadd.f32 %v2243, %v2338
    %v2340 = vpop.f32.mrf.mxu0
    %2341 = vdwg.mxu0
    %v2343 = vsel %vm1513, %v2324, 0
    %v2346 = vsel %vm1513, %v2329, 0
    %2348 = vmatprep.subr.mxu0 0.0
    %2349 = vmatpush1.xpose.msra.mxu0 0.0
    %2350 = vmatprep.subr.mxu0 0.0
    %2351 = vmatpush1.xpose.msra.mxu0 0.0
    %2352 = vmatprep.subr.mxu0 0.0
    %2353 = vmatpush1.xpose.msra.mxu0 0.0
    %2354 = vmatprep.subr.mxu0 0.0
    %2355 = vmatpush1.xpose.msra.mxu0 0.0
    %2356 = vmatprep.subr.mxu0 0.0
    %2357 = vmatpush1.xpose.msra.mxu0 0.0
    %2358 = vmatprep.subr.mxu0 0.0
    %2359 = vmatpush1.xpose.msra.mxu0 0.0
    %2360 = vmatprep.subr.mxu0 0.0
    %2361 = vmatpush1.xpose.msra.mxu0 0.0
    %2362 = vmatprep.subr.mxu0 0.0
    %2363 = vmatpush1.xpose.msra.mxu0 0.0
    %2364 = vmatprep.subr.mxu0 0.0
    %2365 = vmatpush1.xpose.msra.mxu0 0.0
    %2366 = vmatprep.subr.mxu0 0.0
    %2367 = vmatpush1.xpose.msra.mxu0 0.0
    %2368 = vmatprep.subr.mxu0 0.0
    %2369 = vmatpush1.xpose.msra.mxu0 0.0
    %2370 = vmatprep.subr.mxu0 0.0
    %2371 = vmatpush1.xpose.msra.mxu0 0.0
    %2372 = vmatprep.subr.mxu0 0.0
    %2373 = vmatpush1.xpose.msra.mxu0 0.0
    %2374 = vmatprep.subr.mxu0 0.0
    %2375 = vmatpush1.xpose.msra.mxu0 0.0
    %2376 = vmatprep.subr.mxu0 0.0
    %2377 = vmatpush1.xpose.msra.mxu0 %v2249
    %2378 = vmatprep.subr.mxu0 0.0
    %2379 = vmatpush1.xpose.msra.mxu0 %v2246
    %2380 = vmatprep.subr.mxu0 0.0
    %2381 = vmatpush2.xpose.msra.mxu0 0.0
    %2382 = vmatprep.subr.mxu0 0.0
    %2383 = vmatpush2.xpose.msra.mxu0 0.0
    %2384 = vmatprep.subr.mxu0 0.0
    %2385 = vmatpush2.xpose.msra.mxu0 0.0
    %2386 = vmatprep.subr.mxu0 0.0
    %2387 = vmatpush2.xpose.msra.mxu0 0.0
    %2388 = vmatprep.subr.mxu0 0.0
    %2389 = vmatpush2.xpose.msra.mxu0 0.0
    %2390 = vmatprep.subr.mxu0 0.0
    %2391 = vmatpush2.xpose.msra.mxu0 0.0
    %2392 = vmatprep.subr.mxu0 0.0
    %2393 = vmatpush2.xpose.msra.mxu0 0.0
    %2394 = vmatprep.subr.mxu0 0.0
    %2395 = vmatpush2.xpose.msra.mxu0 0.0
    %2396 = vmatprep.subr.mxu0 0.0
    %2397 = vmatpush2.xpose.msra.mxu0 0.0
    %2398 = vmatprep.subr.mxu0 0.0
    %2399 = vmatpush2.xpose.msra.mxu0 0.0
    %2400 = vmatprep.subr.mxu0 0.0
    %2401 = vmatpush2.xpose.msra.mxu0 0.0
    %2402 = vmatprep.subr.mxu0 0.0
    %2403 = vmatpush2.xpose.msra.mxu0 0.0
    %2404 = vmatprep.subr.mxu0 0.0
    %2405 = vmatpush2.xpose.msra.mxu0 0.0
    %2406 = vmatprep.subr.mxu0 0.0
    %2407 = vmatpush2.xpose.msra.mxu0 0.0
    %2408 = vmatprep.subr.mxu0 0.0
    %2409 = vmatpush2.xpose.msra.mxu0 0.0
    %2410 = vmatprep.subr.mxu0 0.0
    %2411 = vmatpush2.xpose.msra.mxu0 0.0
    %2412 = vmatprep.mubr.f32.mxu0 0.0
    %2413 = vmatmul.mubr.f32.gmra.mxu0 %v2343
    %v2414 = vpop.f32.mrf.mxu0
    %v2415 = vadd.f32 0.0, %v2414
    %v2416 = vpop.f32.mrf.mxu0
    %2417 = vmatprep.mubr.f32.mxu0 0.0
    %2418 = vmatmul.mubr.f32.gmra.mxu0 %v2346
    %v2419 = vpop.f32.mrf.mxu0
    %v2420 = vadd.f32 0.0, %v2419
    %v2421 = vpop.f32.mrf.mxu0
    %2422 = vdwg.mxu0
    %2423 = vst.msk [vmem:[#allocation16] sm:$0xff] %vm293, %v2415
    %2424 = vst.msk [vmem:[#allocation16 + $0x8] sm:$0xff] %vm293, %v2420
    %v2426 = vsel %vm1513, %v2334, 0
    %v2429 = vsel %vm1513, %v2339, 0
    %2431 = vmatprep.subr.mxu0 0.0
    %2432 = vmatpush1.xpose.msra.mxu0 0.0
    %2433 = vmatprep.subr.mxu0 0.0
    %2434 = vmatpush1.xpose.msra.mxu0 0.0
    %2435 = vmatprep.subr.mxu0 0.0
    %2436 = vmatpush1.xpose.msra.mxu0 0.0
    %2437 = vmatprep.subr.mxu0 0.0
    %2438 = vmatpush1.xpose.msra.mxu0 0.0
    %2439 = vmatprep.subr.mxu0 0.0
    %2440 = vmatpush1.xpose.msra.mxu0 0.0
    %2441 = vmatprep.subr.mxu0 0.0
    %2442 = vmatpush1.xpose.msra.mxu0 0.0
    %2443 = vmatprep.subr.mxu0 0.0
    %2444 = vmatpush1.xpose.msra.mxu0 0.0
    %2445 = vmatprep.subr.mxu0 0.0
    %2446 = vmatpush1.xpose.msra.mxu0 0.0
    %2447 = vmatprep.subr.mxu0 0.0
    %2448 = vmatpush1.xpose.msra.mxu0 0.0
    %2449 = vmatprep.subr.mxu0 0.0
    %2450 = vmatpush1.xpose.msra.mxu0 0.0
    %2451 = vmatprep.subr.mxu0 0.0
    %2452 = vmatpush1.xpose.msra.mxu0 0.0
    %2453 = vmatprep.subr.mxu0 0.0
    %2454 = vmatpush1.xpose.msra.mxu0 0.0
    %2455 = vmatprep.subr.mxu0 0.0
    %2456 = vmatpush1.xpose.msra.mxu0 0.0
    %2457 = vmatprep.subr.mxu0 0.0
    %2458 = vmatpush1.xpose.msra.mxu0 0.0
    %2459 = vmatprep.subr.mxu0 0.0
    %2460 = vmatpush1.xpose.msra.mxu0 %v2255
    %2461 = vmatprep.subr.mxu0 0.0
    %2462 = vmatpush1.xpose.msra.mxu0 %v2252
    %2463 = vmatprep.subr.mxu0 0.0
    %2464 = vmatpush2.xpose.msra.mxu0 0.0
    %2465 = vmatprep.subr.mxu0 0.0
    %2466 = vmatpush2.xpose.msra.mxu0 0.0
    %2467 = vmatprep.subr.mxu0 0.0
    %2468 = vmatpush2.xpose.msra.mxu0 0.0
    %2469 = vmatprep.subr.mxu0 0.0
    %2470 = vmatpush2.xpose.msra.mxu0 0.0
    %2471 = vmatprep.subr.mxu0 0.0
    %2472 = vmatpush2.xpose.msra.mxu0 0.0
    %2473 = vmatprep.subr.mxu0 0.0
    %2474 = vmatpush2.xpose.msra.mxu0 0.0
    %2475 = vmatprep.subr.mxu0 0.0
    %2476 = vmatpush2.xpose.msra.mxu0 0.0
    %2477 = vmatprep.subr.mxu0 0.0
    %2478 = vmatpush2.xpose.msra.mxu0 0.0
    %2479 = vmatprep.subr.mxu0 0.0
    %2480 = vmatpush2.xpose.msra.mxu0 0.0
    %2481 = vmatprep.subr.mxu0 0.0
    %2482 = vmatpush2.xpose.msra.mxu0 0.0
    %2483 = vmatprep.subr.mxu0 0.0
    %2484 = vmatpush2.xpose.msra.mxu0 0.0
    %2485 = vmatprep.subr.mxu0 0.0
    %2486 = vmatpush2.xpose.msra.mxu0 0.0
    %2487 = vmatprep.subr.mxu0 0.0
    %2488 = vmatpush2.xpose.msra.mxu0 0.0
    %2489 = vmatprep.subr.mxu0 0.0
    %2490 = vmatpush2.xpose.msra.mxu0 0.0
    %2491 = vmatprep.subr.mxu0 0.0
    %2492 = vmatpush2.xpose.msra.mxu0 0.0
    %2493 = vmatprep.subr.mxu0 0.0
    %2494 = vmatpush2.xpose.msra.mxu0 0.0
    %2495 = vmatprep.mubr.f32.mxu0 0.0
    %2496 = vmatmul.mubr.f32.gmra.mxu0 %v2426
    %v2497 = vpop.f32.mrf.mxu0
    %v2498 = vadd.f32 0.0, %v2497
    %v2499 = vpop.f32.mrf.mxu0
    %2500 = vmatprep.mubr.f32.mxu0 0.0
    %2501 = vmatmul.mubr.f32.gmra.mxu0 %v2429
    %v2502 = vpop.f32.mrf.mxu0
    %v2503 = vadd.f32 0.0, %v2502
    %v2504 = vpop.f32.mrf.mxu0
    %2505 = vdwg.mxu0
    %s2506 = scalar_lea.vmem [#allocation16], 16
    %2507 = vst.msk [vmem:[%s2506] sm:$0xff] %vm293, %v2498
    %2508 = vst.msk [vmem:[%s2506 + $0x8] sm:$0xff] %vm293, %v2503
    // Predicated region
    $region82: #{tpu_custom_call.1} parent=1 // pred_check
      _
    $region83: #{tpu_custom_call.1} parent=1 // pred_check_branch
      %2510 = sbr.rel (0) target = $region85
    $region84: #{tpu_custom_call.1} parent=1 // pred_region
      %s2512 = ssub.s32 512, 512
      %2513 = vsyncadd [#allocation4], %s2512
      %s2514 = sshll.u32 [#allocation16], 4
      %s2515 = int_to_ptr.vmem [resolvable:$true] %s2514
      %2520 = dma.vmem_to_hbm [thread:$0]  %s2515, 512, %s12, [#allocation4], 128, 128, 8
    $region85: #{tpu_custom_call.1} parent=1 // pred_fallthru
      _
    // Predicated region
    $region86: #{tpu_custom_call.1} parent=1 // pred_check
      _
    $region87: #{tpu_custom_call.1} parent=1 // pred_check_branch
      %2522 = sbr.rel (0) target = $region89
    $region88: #{tpu_custom_call.1} parent=1 // pred_region
      %2523 = dma.done [#allocation4], 512
    $region89: #{tpu_custom_call.1} parent=1 // pred_fallthru
      _
    %2524 = vsyncpa [#allocation3], 1
    %2525 = vsyncpa [#allocation6], 1
    %2526 = vsyncpa [#allocation9], 1
    %2527 = vsyncpa [#allocation12], 1
    %2528 = vsyncpa [#allocation15], 1
    %2529 = vsyncpa [#allocation4], 1

</llo_original>
